<compile_context>
chip_gen: v5e
topology: v5e:2x2
jax: 0.10.0
libtpu: 0.0.40
codegen_flags: <defaults>
</compile_context>

<pallas_src>
import functools
import math

import jax
import jax.numpy as jnp
from jax import lax
from jax.experimental import pallas as pl
from jax.experimental.pallas import tpu as pltpu

# ----------------------------- model hyper-params (small) -----------------------------
BATCH = 2
SEQ = 8
HIDDEN = 32
HEADS = 4
LOCAL_HEADS = 1              # h_l
KERNEL_SIZE = 3
HEAD_SIZE = HIDDEN // HEADS  # head_size == d_k == 8
FFN_HIDDEN = 64
LN_EPS = 1e-6


# ----------------------------------- fused kernel -----------------------------------
def _layernorm(x, gamma, beta, n):
    # BERT-pytorch LayerNorm: gamma * (x - mean) / (std_unbiased + eps) + beta
    mean = jnp.mean(x, axis=-1, keepdims=True)
    var = jnp.sum((x - mean) ** 2, axis=-1, keepdims=True) * (1.0 / (n - 1))
    inv = pl.reciprocal(jnp.sqrt(var) + LN_EPS, approx=True)
    return gamma * (x - mean) * inv + beta


def fused_block_kernel(x_ref, mask_ref, ln1g_ref, ln1b_ref, wqkv_ref, bqkv_ref,
                       convw_ref, convb_ref, wo_ref, bo_ref,
                       ln2g_ref, ln2b_ref, w1_ref, b1_ref, w2_ref, b2_ref,
                       o_ref, *, B, L, D, H, H_L, HS, K):
    H_G = H - H_L
    HHS = H * HS
    pad = (K - 1) // 2
    scale = 1.0 / math.sqrt(HS)

    x = x_ref[...]              # (B*L, D) f32
    mask_add = mask_ref[...]    # (B*L, L) additive mask: 0 visible / -1e9 masked
    conv_w = convw_ref[...]     # (H_L*K*HS, HS) folded conv taps
    conv_b = convb_ref[...]     # (H_L, HS)

    # ---------------- sublayer 1: LayerNorm -> LockerMultiHeadedAttention ----------------
    xn = _layernorm(x, ln1g_ref[...], ln1b_ref[...], D)

    # fused QKV projection: single matmul, heads sliced from the lane dimension
    qkv = jnp.dot(xn, wqkv_ref[...], preferred_element_type=jnp.float32) + bqkv_ref[...]
    q = qkv[:, :HHS]
    k = qkv[:, HHS:2 * HHS]
    v = qkv[:, 2 * HHS:]

    batch_blocks = []
    for b in range(B):                       # static unroll (B is tiny)
        r0, r1 = b * L, (b + 1) * L
        m_b = mask_add[r0:r1, :]
        head_outs = []

        # ---- global heads: masked softmax attention ----
        for g in range(H_G):
            lo, hi = g * HS, (g + 1) * HS
            qb = q[r0:r1, lo:hi]
            kb = k[r0:r1, lo:hi]
            vb = v[r0:r1, lo:hi]
            s = lax.dot_general(qb, kb, (((1,), (1,)), ((), ())),
                                preferred_element_type=jnp.float32) * scale
            s = s + m_b
            s = s - jnp.max(s, axis=-1, keepdims=True)
            p = jnp.exp(s)
            p = p * pl.reciprocal(jnp.sum(p, axis=-1, keepdims=True), approx=True)
            head_outs.append(jnp.dot(p, vb, preferred_element_type=jnp.float32))

        # ---- local heads: "same" Conv1d over time on V of the last h_l heads, ReLU ----
        for i in range(H_L):
            hidx = H_G + i
            lo, hi = hidx * HS, (hidx + 1) * HS
            vb = v[r0:r1, lo:hi]             # (L, HS)
            taps = []
            for t in range(K):
                s_off = t - pad
                if s_off < 0:                # zero-pad at the top
                    shifted = jnp.concatenate(
                        [jnp.zeros((-s_off, HS), jnp.float32), vb[:L + s_off, :]], axis=0)
                elif s_off > 0:              # zero-pad at the bottom
                    shifted = jnp.concatenate(
                        [vb[s_off:, :], jnp.zeros((s_off, HS), jnp.float32)], axis=0)
                else:
                    shifted = vb
                taps.append(shifted)
            stacked = jnp.concatenate(taps, axis=1)                  # (L, K*HS)
            w_i = conv_w[i * K * HS:(i + 1) * K * HS, :]             # (K*HS, HS)
            b_i = conv_b[i:i + 1, :]                                 # (1, HS)
            conv_out = jnp.dot(stacked, w_i, preferred_element_type=jnp.float32) + b_i
            head_outs.append(jnp.maximum(conv_out, 0.0))

        batch_blocks.append(jnp.concatenate(head_outs, axis=1))      # (L, H*HS)

    attn_heads = jnp.concatenate(batch_blocks, axis=0)               # (B*L, H*HS)

    # output projection + residual (dropout = identity in eval)
    attn = jnp.dot(attn_heads, wo_ref[...], preferred_element_type=jnp.float32) + bo_ref[...]
    x1 = x + attn

    # ---------------- sublayer 2: LayerNorm -> PositionwiseFeedForward ----------------
    xn2 = _layernorm(x1, ln2g_ref[...], ln2b_ref[...], D)
    h1 = jnp.dot(xn2, w1_ref[...], preferred_element_type=jnp.float32) + b1_ref[...]
    # GELU (tanh approximation, as in BERT-pytorch); cube computed as h*h*h
    h1 = 0.5 * h1 * (1.0 + jnp.tanh(math.sqrt(2.0 / math.pi)
                                    * (h1 + 0.044715 * (h1 * h1 * h1))))
    ff = jnp.dot(h1, w2_ref[...], preferred_element_type=jnp.float32) + b2_ref[...]

    o_ref[...] = (x1 + ff).astype(o_ref.dtype)


# ----------------------------------- wrapper -----------------------------------
def _full(shape):
    zeros = (0,) * len(shape)
    return pl.BlockSpec(shape, lambda i, z=zeros: z)


def locker_transformer_block(x, mask, p):
    B, L, D = x.shape
    H, H_L, HS, K = HEADS, LOCAL_HEADS, HEAD_SIZE, KERNEL_SIZE
    BL, HHS = B * L, HEADS * HEAD_SIZE

    x2d = x.reshape(BL, D)
    # additive mask computed once outside the kernel (matches masked_fill(mask==0, -1e9))
    mask_add = jnp.where(mask.reshape(B, L, L) == 0, -1000000000.0, 0.0)
    mask_add = mask_add.astype(jnp.float32).reshape(BL, L)

    kern = functools.partial(fused_block_kernel,
                             B=B, L=L, D=D, H=H, H_L=H_L, HS=HS, K=K)
    out2d = pl.pallas_call(
        kern,
        out_shape=jax.ShapeDtypeStruct((BL, D), x.dtype),
        grid=(1,),
        in_specs=[
            _full((BL, D)),                        # x
            _full((BL, L)),                        # additive attention mask
            _full((1, D)), _full((1, D)),          # ln1 gamma / beta
            _full((D, 3 * HHS)), _full((1, 3 * HHS)),        # fused QKV weight / bias
            _full((H_L * K * HS, HS)), _full((H_L, HS)),     # conv weight / bias (folded)
            _full((HHS, D)), _full((1, D)),        # output projection weight / bias
            _full((1, D)), _full((1, D)),          # ln2 gamma / beta
            _full((D, FFN_HIDDEN)), _full((1, FFN_HIDDEN)),  # FFN w1 / b1
            _full((FFN_HIDDEN, D)), _full((1, D)),           # FFN w2 / b2
        ],
        out_specs=_full((BL, D)),
        compiler_params=pltpu.CompilerParams(dimension_semantics=("arbitrary",)),
    )(x2d, mask_add,
      p["ln1_g"], p["ln1_b"], p["wqkv"], p["bqkv"],
      p["conv_w"], p["conv_b"], p["wo"], p["bo"],
      p["ln2_g"], p["ln2_b"], p["w1"], p["b1"], p["w2"], p["b2"])
    return out2d.reshape(B, L, D)


locker_transformer_block = jax.jit(locker_transformer_block)


# ---------------------------------- parameter init ----------------------------------
def init_params(key):
    keys = jax.random.split(key, 8)

    def lin(k, din, dout):
        lim = 1.0 / math.sqrt(din)
        kw, kb = jax.random.split(k)
        w = jax.random.uniform(kw, (din, dout), jnp.float32, -lim, lim)
        b = jax.random.uniform(kb, (dout,), jnp.float32, -lim, lim)
        return w, b

    D, hs, K, h_l = HIDDEN, HEAD_SIZE, KERNEL_SIZE, LOCAL_HEADS
    hhs = HEADS * hs
    wq, bq = lin(keys[0], D, hhs)
    wk, bk = lin(keys[1], D, hhs)
    wv, bv = lin(keys[2], D, hhs)
    wo, bo = lin(keys[3], hhs, D)
    w1, b1 = lin(keys[4], D, FFN_HIDDEN)
    w2, b2 = lin(keys[5], FFN_HIDDEN, D)

    clim = 1.0 / math.sqrt(hs * K)
    # channels-last conv weights: w[i, t, ci, co] == torch_weight[co, ci, t]
    conv_w = jax.random.uniform(keys[6], (h_l, K, hs, hs), jnp.float32, -clim, clim)
    conv_b = jax.random.uniform(keys[7], (h_l, hs), jnp.float32, -clim, clim)

    return dict(
        wqkv=jnp.concatenate([wq, wk, wv], axis=1),                     # (D, 3*h*hs)
        bqkv=jnp.concatenate([bq, bk, bv], axis=0).reshape(1, 3 * hhs),
        wo=wo, bo=bo.reshape(1, D),
        conv_w=conv_w.reshape(h_l * K * hs, hs),                        # taps folded, 2-D
        conv_b=conv_b.reshape(h_l, hs),
        w1=w1, b1=b1.reshape(1, FFN_HIDDEN),
        w2=w2, b2=b2.reshape(1, D),
        ln1_g=jnp.ones((1, D), jnp.float32), ln1_b=jnp.zeros((1, D), jnp.float32),
        ln2_g=jnp.ones((1, D), jnp.float32), ln2_b=jnp.zeros((1, D), jnp.float32),
    )


# --------------------------------------- main ---------------------------------------
if __name__ == "__main__":
    key = jax.random.PRNGKey(0)
    k_x, k_p = jax.random.split(key)

    x = jax.random.normal(k_x, (BATCH, SEQ, HIDDEN), jnp.float32)
    # causal mask (B, 1, L, L); entries == 0 are masked (as in PyTorch masked_fill)
    mask = jnp.broadcast_to(jnp.tril(jnp.ones((SEQ, SEQ), jnp.int32)),
                            (BATCH, 1, SEQ, SEQ))
    params = init_params(k_p)

    out = locker_transformer_block(x, mask, params)
    jax.block_until_ready(out)
    assert out.shape == (BATCH, SEQ, HIDDEN)
    assert bool(jnp.all(jnp.isfinite(out)))
    print("KERNEL_OK")
</pallas_src>

<mosaic_0001>
module attributes {stable_mosaic.version = 11 : i64} {
  func.func @fused_block_kernel(%arg0: i32, %arg1: memref<16x32xf32, #tpu.memory_space<vmem>>, %arg2: memref<16x8xf32, #tpu.memory_space<vmem>>, %arg3: memref<1x32xf32, #tpu.memory_space<vmem>>, %arg4: memref<1x32xf32, #tpu.memory_space<vmem>>, %arg5: memref<32x96xf32, #tpu.memory_space<vmem>>, %arg6: memref<1x96xf32, #tpu.memory_space<vmem>>, %arg7: memref<24x8xf32, #tpu.memory_space<vmem>>, %arg8: memref<1x8xf32, #tpu.memory_space<vmem>>, %arg9: memref<32x32xf32, #tpu.memory_space<vmem>>, %arg10: memref<1x32xf32, #tpu.memory_space<vmem>>, %arg11: memref<1x32xf32, #tpu.memory_space<vmem>>, %arg12: memref<1x32xf32, #tpu.memory_space<vmem>>, %arg13: memref<32x64xf32, #tpu.memory_space<vmem>>, %arg14: memref<1x64xf32, #tpu.memory_space<vmem>>, %arg15: memref<64x32xf32, #tpu.memory_space<vmem>>, %arg16: memref<1x32xf32, #tpu.memory_space<vmem>>, %arg17: memref<16x32xf32, #tpu.memory_space<vmem>>) attributes {dimension_semantics = [#tpu.dimension_semantics<arbitrary>], iteration_bounds = array<i64: 1>, scalar_prefetch = 0 : i64, scratch_operands = 0 : i64, tpu.core_type = #tpu.core_type<tc>, window_params = [{pipeline_mode = #tpu.pipeline_mode<synchronous>, transform_indices = @transform_0, window_bounds = array<i64: 16, 32>}, {pipeline_mode = #tpu.pipeline_mode<synchronous>, transform_indices = @transform_1, window_bounds = array<i64: 16, 8>}, {pipeline_mode = #tpu.pipeline_mode<synchronous>, transform_indices = @transform_2, window_bounds = array<i64: 1, 32>}, {pipeline_mode = #tpu.pipeline_mode<synchronous>, transform_indices = @transform_3, window_bounds = array<i64: 1, 32>}, {pipeline_mode = #tpu.pipeline_mode<synchronous>, transform_indices = @transform_4, window_bounds = array<i64: 32, 96>}, {pipeline_mode = #tpu.pipeline_mode<synchronous>, transform_indices = @transform_5, window_bounds = array<i64: 1, 96>}, {pipeline_mode = #tpu.pipeline_mode<synchronous>, transform_indices = @transform_6, window_bounds = array<i64: 24, 8>}, {pipeline_mode = #tpu.pipeline_mode<synchronous>, transform_indices = @transform_7, window_bounds = array<i64: 1, 8>}, {pipeline_mode = #tpu.pipeline_mode<synchronous>, transform_indices = @transform_8, window_bounds = array<i64: 32, 32>}, {pipeline_mode = #tpu.pipeline_mode<synchronous>, transform_indices = @transform_9, window_bounds = array<i64: 1, 32>}, {pipeline_mode = #tpu.pipeline_mode<synchronous>, transform_indices = @transform_10, window_bounds = array<i64: 1, 32>}, {pipeline_mode = #tpu.pipeline_mode<synchronous>, transform_indices = @transform_11, window_bounds = array<i64: 1, 32>}, {pipeline_mode = #tpu.pipeline_mode<synchronous>, transform_indices = @transform_12, window_bounds = array<i64: 32, 64>}, {pipeline_mode = #tpu.pipeline_mode<synchronous>, transform_indices = @transform_13, window_bounds = array<i64: 1, 64>}, {pipeline_mode = #tpu.pipeline_mode<synchronous>, transform_indices = @transform_14, window_bounds = array<i64: 64, 32>}, {pipeline_mode = #tpu.pipeline_mode<synchronous>, transform_indices = @transform_15, window_bounds = array<i64: 1, 32>}, {pipeline_mode = #tpu.pipeline_mode<synchronous>, transform_indices = @transform_16, window_bounds = array<i64: 16, 32>}]} {
    %c0 = arith.constant 0 : index
    %c0_0 = arith.constant 0 : index
    %0 = vector.load %arg1[%c0, %c0_0] : memref<16x32xf32, #tpu.memory_space<vmem>>, vector<16x32xf32>
    %c0_1 = arith.constant 0 : index
    %c0_2 = arith.constant 0 : index
    %1 = vector.load %arg2[%c0_1, %c0_2] : memref<16x8xf32, #tpu.memory_space<vmem>>, vector<16x8xf32>
    %c0_3 = arith.constant 0 : index
    %c0_4 = arith.constant 0 : index
    %2 = vector.load %arg7[%c0_3, %c0_4] : memref<24x8xf32, #tpu.memory_space<vmem>>, vector<24x8xf32>
    %c0_5 = arith.constant 0 : index
    %c0_6 = arith.constant 0 : index
    %3 = vector.load %arg8[%c0_5, %c0_6] : memref<1x8xf32, #tpu.memory_space<vmem>>, vector<1x8xf32>
    %c0_7 = arith.constant 0 : index
    %c0_8 = arith.constant 0 : index
    %4 = vector.load %arg3[%c0_7, %c0_8] : memref<1x32xf32, #tpu.memory_space<vmem>>, vector<1x32xf32>
    %c0_9 = arith.constant 0 : index
    %c0_10 = arith.constant 0 : index
    %5 = vector.load %arg4[%c0_9, %c0_10] : memref<1x32xf32, #tpu.memory_space<vmem>>, vector<1x32xf32>
    %cst = arith.constant dense<0.000000e+00> : vector<16xf32>
    %6 = vector.multi_reduction <add>, %0, %cst [1] : vector<16x32xf32> to vector<16xf32>
    %7 = vector.shape_cast %6 : vector<16xf32> to vector<16x1xf32>
    %cst_11 = arith.constant 3.200000e+01 : f32
    %8 = vector.broadcast %cst_11 : f32 to vector<16x1xf32>
    %9 = arith.divf %7, %8 : vector<16x1xf32>
    %10 = vector.broadcast %9 : vector<16x1xf32> to vector<16x32xf32>
    %11 = arith.subf %0, %10 : vector<16x32xf32>
    %12 = arith.mulf %11, %11 : vector<16x32xf32>
    %cst_12 = arith.constant dense<0.000000e+00> : vector<16xf32>
    %13 = vector.multi_reduction <add>, %12, %cst_12 [1] : vector<16x32xf32> to vector<16xf32>
    %14 = vector.shape_cast %13 : vector<16xf32> to vector<16x1xf32>
    %cst_13 = arith.constant 0.0322580636 : f32
    %15 = vector.broadcast %cst_13 : f32 to vector<16x1xf32>
    %16 = arith.mulf %14, %15 : vector<16x1xf32>
    %17 = math.sqrt %16 : vector<16x1xf32>
    %cst_14 = arith.constant 9.99999997E-7 : f32
    %18 = vector.broadcast %cst_14 : f32 to vector<16x1xf32>
    %19 = arith.addf %17, %18 : vector<16x1xf32>
    %20 = tpu.reciprocal %19 {approx = true} : vector<16x1xf32> -> vector<16x1xf32>
    %21 = vector.broadcast %9 : vector<16x1xf32> to vector<16x32xf32>
    %22 = arith.subf %0, %21 : vector<16x32xf32>
    %23 = vector.broadcast %4 : vector<1x32xf32> to vector<16x32xf32>
    %24 = arith.mulf %23, %22 : vector<16x32xf32>
    %25 = vector.broadcast %20 : vector<16x1xf32> to vector<16x32xf32>
    %26 = arith.mulf %24, %25 : vector<16x32xf32>
    %27 = vector.broadcast %5 : vector<1x32xf32> to vector<16x32xf32>
    %28 = arith.addf %26, %27 : vector<16x32xf32>
    %c0_15 = arith.constant 0 : index
    %c0_16 = arith.constant 0 : index
    %29 = vector.load %arg5[%c0_15, %c0_16] : memref<32x96xf32, #tpu.memory_space<vmem>>, vector<32x96xf32>
    %cst_17 = arith.constant dense<0.000000e+00> : vector<16x96xf32>
    %30 = tpu.matmul %28, %29, %cst_17 {dimension_numbers = #tpu.dot_dimension_numbers<[1], [0], [0], [1], [0, 0, 1, 1], [], []>} : vector<16x32xf32>, vector<32x96xf32>, vector<16x96xf32> -> vector<16x96xf32>
    %c0_18 = arith.constant 0 : index
    %c0_19 = arith.constant 0 : index
    %31 = vector.load %arg6[%c0_18, %c0_19] : memref<1x96xf32, #tpu.memory_space<vmem>>, vector<1x96xf32>
    %32 = vector.broadcast %31 : vector<1x96xf32> to vector<16x96xf32>
    %33 = arith.addf %30, %32 : vector<16x96xf32>
    %34 = vector.extract_strided_slice %33 {offsets = [0, 0], sizes = [16, 32], strides = [1, 1]} : vector<16x96xf32> to vector<16x32xf32>
    %35 = vector.extract_strided_slice %33 {offsets = [0, 32], sizes = [16, 32], strides = [1, 1]} : vector<16x96xf32> to vector<16x32xf32>
    %36 = vector.extract_strided_slice %33 {offsets = [0, 64], sizes = [16, 32], strides = [1, 1]} : vector<16x96xf32> to vector<16x32xf32>
    %37 = vector.extract_strided_slice %1 {offsets = [0, 0], sizes = [8, 8], strides = [1, 1]} : vector<16x8xf32> to vector<8x8xf32>
    %38 = vector.extract_strided_slice %34 {offsets = [0, 0], sizes = [8, 8], strides = [1, 1]} : vector<16x32xf32> to vector<8x8xf32>
    %39 = vector.extract_strided_slice %35 {offsets = [0, 0], sizes = [8, 8], strides = [1, 1]} : vector<16x32xf32> to vector<8x8xf32>
    %40 = vector.extract_strided_slice %36 {offsets = [0, 0], sizes = [8, 8], strides = [1, 1]} : vector<16x32xf32> to vector<8x8xf32>
    %cst_20 = arith.constant dense<0.000000e+00> : vector<8x8xf32>
    %41 = tpu.matmul %38, %39, %cst_20 {dimension_numbers = #tpu.dot_dimension_numbers<[1], [1], [0], [0], [0, 0, 1, 0], [], []>} : vector<8x8xf32>, vector<8x8xf32>, vector<8x8xf32> -> vector<8x8xf32>
    %cst_21 = arith.constant 0.353553385 : f32
    %42 = vector.broadcast %cst_21 : f32 to vector<8x8xf32>
    %43 = arith.mulf %41, %42 : vector<8x8xf32>
    %44 = arith.addf %43, %37 : vector<8x8xf32>
    %cst_22 = arith.constant dense<0xFF800000> : vector<8xf32>
    %45 = vector.multi_reduction <maximumf>, %44, %cst_22 [1] : vector<8x8xf32> to vector<8xf32>
    %46 = vector.shape_cast %45 : vector<8xf32> to vector<8x1xf32>
    %47 = vector.broadcast %46 : vector<8x1xf32> to vector<8x8xf32>
    %48 = arith.subf %44, %47 : vector<8x8xf32>
    %49 = math.exp %48 : vector<8x8xf32>
    %cst_23 = arith.constant dense<0.000000e+00> : vector<8xf32>
    %50 = vector.multi_reduction <add>, %49, %cst_23 [1] : vector<8x8xf32> to vector<8xf32>
    %51 = vector.shape_cast %50 : vector<8xf32> to vector<8x1xf32>
    %52 = tpu.reciprocal %51 {approx = true} : vector<8x1xf32> -> vector<8x1xf32>
    %53 = vector.broadcast %52 : vector<8x1xf32> to vector<8x8xf32>
    %54 = arith.mulf %49, %53 : vector<8x8xf32>
    %cst_24 = arith.constant dense<0.000000e+00> : vector<8x8xf32>
    %55 = tpu.matmul %54, %40, %cst_24 {dimension_numbers = #tpu.dot_dimension_numbers<[1], [0], [0], [1], [0, 0, 1, 1], [], []>} : vector<8x8xf32>, vector<8x8xf32>, vector<8x8xf32> -> vector<8x8xf32>
    %56 = vector.extract_strided_slice %34 {offsets = [0, 8], sizes = [8, 8], strides = [1, 1]} : vector<16x32xf32> to vector<8x8xf32>
    %57 = vector.extract_strided_slice %35 {offsets = [0, 8], sizes = [8, 8], strides = [1, 1]} : vector<16x32xf32> to vector<8x8xf32>
    %58 = vector.extract_strided_slice %36 {offsets = [0, 8], sizes = [8, 8], strides = [1, 1]} : vector<16x32xf32> to vector<8x8xf32>
    %cst_25 = arith.constant dense<0.000000e+00> : vector<8x8xf32>
    %59 = tpu.matmul %56, %57, %cst_25 {dimension_numbers = #tpu.dot_dimension_numbers<[1], [1], [0], [0], [0, 0, 1, 0], [], []>} : vector<8x8xf32>, vector<8x8xf32>, vector<8x8xf32> -> vector<8x8xf32>
    %cst_26 = arith.constant 0.353553385 : f32
    %60 = vector.broadcast %cst_26 : f32 to vector<8x8xf32>
    %61 = arith.mulf %59, %60 : vector<8x8xf32>
    %62 = arith.addf %61, %37 : vector<8x8xf32>
    %cst_27 = arith.constant dense<0xFF800000> : vector<8xf32>
    %63 = vector.multi_reduction <maximumf>, %62, %cst_27 [1] : vector<8x8xf32> to vector<8xf32>
    %64 = vector.shape_cast %63 : vector<8xf32> to vector<8x1xf32>
    %65 = vector.broadcast %64 : vector<8x1xf32> to vector<8x8xf32>
    %66 = arith.subf %62, %65 : vector<8x8xf32>
    %67 = math.exp %66 : vector<8x8xf32>
    %cst_28 = arith.constant dense<0.000000e+00> : vector<8xf32>
    %68 = vector.multi_reduction <add>, %67, %cst_28 [1] : vector<8x8xf32> to vector<8xf32>
    %69 = vector.shape_cast %68 : vector<8xf32> to vector<8x1xf32>
    %70 = tpu.reciprocal %69 {approx = true} : vector<8x1xf32> -> vector<8x1xf32>
    %71 = vector.broadcast %70 : vector<8x1xf32> to vector<8x8xf32>
    %72 = arith.mulf %67, %71 : vector<8x8xf32>
    %cst_29 = arith.constant dense<0.000000e+00> : vector<8x8xf32>
    %73 = tpu.matmul %72, %58, %cst_29 {dimension_numbers = #tpu.dot_dimension_numbers<[1], [0], [0], [1], [0, 0, 1, 1], [], []>} : vector<8x8xf32>, vector<8x8xf32>, vector<8x8xf32> -> vector<8x8xf32>
    %74 = vector.extract_strided_slice %34 {offsets = [0, 16], sizes = [8, 8], strides = [1, 1]} : vector<16x32xf32> to vector<8x8xf32>
    %75 = vector.extract_strided_slice %35 {offsets = [0, 16], sizes = [8, 8], strides = [1, 1]} : vector<16x32xf32> to vector<8x8xf32>
    %76 = vector.extract_strided_slice %36 {offsets = [0, 16], sizes = [8, 8], strides = [1, 1]} : vector<16x32xf32> to vector<8x8xf32>
    %cst_30 = arith.constant dense<0.000000e+00> : vector<8x8xf32>
    %77 = tpu.matmul %74, %75, %cst_30 {dimension_numbers = #tpu.dot_dimension_numbers<[1], [1], [0], [0], [0, 0, 1, 0], [], []>} : vector<8x8xf32>, vector<8x8xf32>, vector<8x8xf32> -> vector<8x8xf32>
    %cst_31 = arith.constant 0.353553385 : f32
    %78 = vector.broadcast %cst_31 : f32 to vector<8x8xf32>
    %79 = arith.mulf %77, %78 : vector<8x8xf32>
    %80 = arith.addf %79, %37 : vector<8x8xf32>
    %cst_32 = arith.constant dense<0xFF800000> : vector<8xf32>
    %81 = vector.multi_reduction <maximumf>, %80, %cst_32 [1] : vector<8x8xf32> to vector<8xf32>
    %82 = vector.shape_cast %81 : vector<8xf32> to vector<8x1xf32>
    %83 = vector.broadcast %82 : vector<8x1xf32> to vector<8x8xf32>
    %84 = arith.subf %80, %83 : vector<8x8xf32>
    %85 = math.exp %84 : vector<8x8xf32>
    %cst_33 = arith.constant dense<0.000000e+00> : vector<8xf32>
    %86 = vector.multi_reduction <add>, %85, %cst_33 [1] : vector<8x8xf32> to vector<8xf32>
    %87 = vector.shape_cast %86 : vector<8xf32> to vector<8x1xf32>
    %88 = tpu.reciprocal %87 {approx = true} : vector<8x1xf32> -> vector<8x1xf32>
    %89 = vector.broadcast %88 : vector<8x1xf32> to vector<8x8xf32>
    %90 = arith.mulf %85, %89 : vector<8x8xf32>
    %cst_34 = arith.constant dense<0.000000e+00> : vector<8x8xf32>
    %91 = tpu.matmul %90, %76, %cst_34 {dimension_numbers = #tpu.dot_dimension_numbers<[1], [0], [0], [1], [0, 0, 1, 1], [], []>} : vector<8x8xf32>, vector<8x8xf32>, vector<8x8xf32> -> vector<8x8xf32>
    %92 = vector.extract_strided_slice %36 {offsets = [0, 24], sizes = [8, 8], strides = [1, 1]} : vector<16x32xf32> to vector<8x8xf32>
    %cst_35 = arith.constant 0.000000e+00 : f32
    %93 = vector.broadcast %cst_35 : f32 to vector<1x8xf32>
    %94 = vector.extract_strided_slice %92 {offsets = [0, 0], sizes = [7, 8], strides = [1, 1]} : vector<8x8xf32> to vector<7x8xf32>
    %95 = tpu.concatenate %93, %94 in 0 : vector<1x8xf32>, vector<7x8xf32> -> vector<8x8xf32>
    %96 = vector.extract_strided_slice %92 {offsets = [1, 0], sizes = [7, 8], strides = [1, 1]} : vector<8x8xf32> to vector<7x8xf32>
    %cst_36 = arith.constant 0.000000e+00 : f32
    %97 = vector.broadcast %cst_36 : f32 to vector<1x8xf32>
    %98 = tpu.concatenate %96, %97 in 0 : vector<7x8xf32>, vector<1x8xf32> -> vector<8x8xf32>
    %99 = tpu.concatenate %95, %92, %98 in 1 : vector<8x8xf32>, vector<8x8xf32>, vector<8x8xf32> -> vector<8x24xf32>
    %cst_37 = arith.constant dense<0.000000e+00> : vector<8x8xf32>
    %100 = tpu.matmul %99, %2, %cst_37 {dimension_numbers = #tpu.dot_dimension_numbers<[1], [0], [0], [1], [0, 0, 1, 1], [], []>} : vector<8x24xf32>, vector<24x8xf32>, vector<8x8xf32> -> vector<8x8xf32>
    %101 = vector.broadcast %3 : vector<1x8xf32> to vector<8x8xf32>
    %102 = arith.addf %100, %101 : vector<8x8xf32>
    %cst_38 = arith.constant 0.000000e+00 : f32
    %103 = vector.broadcast %cst_38 : f32 to vector<8x8xf32>
    %104 = arith.maximumf %102, %103 : vector<8x8xf32>
    %105 = tpu.concatenate %55, %73, %91, %104 in 1 : vector<8x8xf32>, vector<8x8xf32>, vector<8x8xf32>, vector<8x8xf32> -> vector<8x32xf32>
    %106 = vector.extract_strided_slice %1 {offsets = [8, 0], sizes = [8, 8], strides = [1, 1]} : vector<16x8xf32> to vector<8x8xf32>
    %107 = vector.extract_strided_slice %34 {offsets = [8, 0], sizes = [8, 8], strides = [1, 1]} : vector<16x32xf32> to vector<8x8xf32>
    %108 = vector.extract_strided_slice %35 {offsets = [8, 0], sizes = [8, 8], strides = [1, 1]} : vector<16x32xf32> to vector<8x8xf32>
    %109 = vector.extract_strided_slice %36 {offsets = [8, 0], sizes = [8, 8], strides = [1, 1]} : vector<16x32xf32> to vector<8x8xf32>
    %cst_39 = arith.constant dense<0.000000e+00> : vector<8x8xf32>
    %110 = tpu.matmul %107, %108, %cst_39 {dimension_numbers = #tpu.dot_dimension_numbers<[1], [1], [0], [0], [0, 0, 1, 0], [], []>} : vector<8x8xf32>, vector<8x8xf32>, vector<8x8xf32> -> vector<8x8xf32>
    %cst_40 = arith.constant 0.353553385 : f32
    %111 = vector.broadcast %cst_40 : f32 to vector<8x8xf32>
    %112 = arith.mulf %110, %111 : vector<8x8xf32>
    %113 = arith.addf %112, %106 : vector<8x8xf32>
    %cst_41 = arith.constant dense<0xFF800000> : vector<8xf32>
    %114 = vector.multi_reduction <maximumf>, %113, %cst_41 [1] : vector<8x8xf32> to vector<8xf32>
    %115 = vector.shape_cast %114 : vector<8xf32> to vector<8x1xf32>
    %116 = vector.broadcast %115 : vector<8x1xf32> to vector<8x8xf32>
    %117 = arith.subf %113, %116 : vector<8x8xf32>
    %118 = math.exp %117 : vector<8x8xf32>
    %cst_42 = arith.constant dense<0.000000e+00> : vector<8xf32>
    %119 = vector.multi_reduction <add>, %118, %cst_42 [1] : vector<8x8xf32> to vector<8xf32>
    %120 = vector.shape_cast %119 : vector<8xf32> to vector<8x1xf32>
    %121 = tpu.reciprocal %120 {approx = true} : vector<8x1xf32> -> vector<8x1xf32>
    %122 = vector.broadcast %121 : vector<8x1xf32> to vector<8x8xf32>
    %123 = arith.mulf %118, %122 : vector<8x8xf32>
    %cst_43 = arith.constant dense<0.000000e+00> : vector<8x8xf32>
    %124 = tpu.matmul %123, %109, %cst_43 {dimension_numbers = #tpu.dot_dimension_numbers<[1], [0], [0], [1], [0, 0, 1, 1], [], []>} : vector<8x8xf32>, vector<8x8xf32>, vector<8x8xf32> -> vector<8x8xf32>
    %125 = vector.extract_strided_slice %34 {offsets = [8, 8], sizes = [8, 8], strides = [1, 1]} : vector<16x32xf32> to vector<8x8xf32>
    %126 = vector.extract_strided_slice %35 {offsets = [8, 8], sizes = [8, 8], strides = [1, 1]} : vector<16x32xf32> to vector<8x8xf32>
    %127 = vector.extract_strided_slice %36 {offsets = [8, 8], sizes = [8, 8], strides = [1, 1]} : vector<16x32xf32> to vector<8x8xf32>
    %cst_44 = arith.constant dense<0.000000e+00> : vector<8x8xf32>
    %128 = tpu.matmul %125, %126, %cst_44 {dimension_numbers = #tpu.dot_dimension_numbers<[1], [1], [0], [0], [0, 0, 1, 0], [], []>} : vector<8x8xf32>, vector<8x8xf32>, vector<8x8xf32> -> vector<8x8xf32>
    %cst_45 = arith.constant 0.353553385 : f32
    %129 = vector.broadcast %cst_45 : f32 to vector<8x8xf32>
    %130 = arith.mulf %128, %129 : vector<8x8xf32>
    %131 = arith.addf %130, %106 : vector<8x8xf32>
    %cst_46 = arith.constant dense<0xFF800000> : vector<8xf32>
    %132 = vector.multi_reduction <maximumf>, %131, %cst_46 [1] : vector<8x8xf32> to vector<8xf32>
    %133 = vector.shape_cast %132 : vector<8xf32> to vector<8x1xf32>
    %134 = vector.broadcast %133 : vector<8x1xf32> to vector<8x8xf32>
    %135 = arith.subf %131, %134 : vector<8x8xf32>
    %136 = math.exp %135 : vector<8x8xf32>
    %cst_47 = arith.constant dense<0.000000e+00> : vector<8xf32>
    %137 = vector.multi_reduction <add>, %136, %cst_47 [1] : vector<8x8xf32> to vector<8xf32>
    %138 = vector.shape_cast %137 : vector<8xf32> to vector<8x1xf32>
    %139 = tpu.reciprocal %138 {approx = true} : vector<8x1xf32> -> vector<8x1xf32>
    %140 = vector.broadcast %139 : vector<8x1xf32> to vector<8x8xf32>
    %141 = arith.mulf %136, %140 : vector<8x8xf32>
    %cst_48 = arith.constant dense<0.000000e+00> : vector<8x8xf32>
    %142 = tpu.matmul %141, %127, %cst_48 {dimension_numbers = #tpu.dot_dimension_numbers<[1], [0], [0], [1], [0, 0, 1, 1], [], []>} : vector<8x8xf32>, vector<8x8xf32>, vector<8x8xf32> -> vector<8x8xf32>
    %143 = vector.extract_strided_slice %34 {offsets = [8, 16], sizes = [8, 8], strides = [1, 1]} : vector<16x32xf32> to vector<8x8xf32>
    %144 = vector.extract_strided_slice %35 {offsets = [8, 16], sizes = [8, 8], strides = [1, 1]} : vector<16x32xf32> to vector<8x8xf32>
    %145 = vector.extract_strided_slice %36 {offsets = [8, 16], sizes = [8, 8], strides = [1, 1]} : vector<16x32xf32> to vector<8x8xf32>
    %cst_49 = arith.constant dense<0.000000e+00> : vector<8x8xf32>
    %146 = tpu.matmul %143, %144, %cst_49 {dimension_numbers = #tpu.dot_dimension_numbers<[1], [1], [0], [0], [0, 0, 1, 0], [], []>} : vector<8x8xf32>, vector<8x8xf32>, vector<8x8xf32> -> vector<8x8xf32>
    %cst_50 = arith.constant 0.353553385 : f32
    %147 = vector.broadcast %cst_50 : f32 to vector<8x8xf32>
    %148 = arith.mulf %146, %147 : vector<8x8xf32>
    %149 = arith.addf %148, %106 : vector<8x8xf32>
    %cst_51 = arith.constant dense<0xFF800000> : vector<8xf32>
    %150 = vector.multi_reduction <maximumf>, %149, %cst_51 [1] : vector<8x8xf32> to vector<8xf32>
    %151 = vector.shape_cast %150 : vector<8xf32> to vector<8x1xf32>
    %152 = vector.broadcast %151 : vector<8x1xf32> to vector<8x8xf32>
    %153 = arith.subf %149, %152 : vector<8x8xf32>
    %154 = math.exp %153 : vector<8x8xf32>
    %cst_52 = arith.constant dense<0.000000e+00> : vector<8xf32>
    %155 = vector.multi_reduction <add>, %154, %cst_52 [1] : vector<8x8xf32> to vector<8xf32>
    %156 = vector.shape_cast %155 : vector<8xf32> to vector<8x1xf32>
    %157 = tpu.reciprocal %156 {approx = true} : vector<8x1xf32> -> vector<8x1xf32>
    %158 = vector.broadcast %157 : vector<8x1xf32> to vector<8x8xf32>
    %159 = arith.mulf %154, %158 : vector<8x8xf32>
    %cst_53 = arith.constant dense<0.000000e+00> : vector<8x8xf32>
    %160 = tpu.matmul %159, %145, %cst_53 {dimension_numbers = #tpu.dot_dimension_numbers<[1], [0], [0], [1], [0, 0, 1, 1], [], []>} : vector<8x8xf32>, vector<8x8xf32>, vector<8x8xf32> -> vector<8x8xf32>
    %161 = vector.extract_strided_slice %36 {offsets = [8, 24], sizes = [8, 8], strides = [1, 1]} : vector<16x32xf32> to vector<8x8xf32>
    %cst_54 = arith.constant 0.000000e+00 : f32
    %162 = vector.broadcast %cst_54 : f32 to vector<1x8xf32>
    %163 = vector.extract_strided_slice %161 {offsets = [0, 0], sizes = [7, 8], strides = [1, 1]} : vector<8x8xf32> to vector<7x8xf32>
    %164 = tpu.concatenate %162, %163 in 0 : vector<1x8xf32>, vector<7x8xf32> -> vector<8x8xf32>
    %165 = vector.extract_strided_slice %161 {offsets = [1, 0], sizes = [7, 8], strides = [1, 1]} : vector<8x8xf32> to vector<7x8xf32>
    %cst_55 = arith.constant 0.000000e+00 : f32
    %166 = vector.broadcast %cst_55 : f32 to vector<1x8xf32>
    %167 = tpu.concatenate %165, %166 in 0 : vector<7x8xf32>, vector<1x8xf32> -> vector<8x8xf32>
    %168 = tpu.concatenate %164, %161, %167 in 1 : vector<8x8xf32>, vector<8x8xf32>, vector<8x8xf32> -> vector<8x24xf32>
    %cst_56 = arith.constant dense<0.000000e+00> : vector<8x8xf32>
    %169 = tpu.matmul %168, %2, %cst_56 {dimension_numbers = #tpu.dot_dimension_numbers<[1], [0], [0], [1], [0, 0, 1, 1], [], []>} : vector<8x24xf32>, vector<24x8xf32>, vector<8x8xf32> -> vector<8x8xf32>
    %170 = vector.broadcast %3 : vector<1x8xf32> to vector<8x8xf32>
    %171 = arith.addf %169, %170 : vector<8x8xf32>
    %cst_57 = arith.constant 0.000000e+00 : f32
    %172 = vector.broadcast %cst_57 : f32 to vector<8x8xf32>
    %173 = arith.maximumf %171, %172 : vector<8x8xf32>
    %174 = tpu.concatenate %124, %142, %160, %173 in 1 : vector<8x8xf32>, vector<8x8xf32>, vector<8x8xf32>, vector<8x8xf32> -> vector<8x32xf32>
    %175 = tpu.concatenate %105, %174 in 0 : vector<8x32xf32>, vector<8x32xf32> -> vector<16x32xf32>
    %c0_58 = arith.constant 0 : index
    %c0_59 = arith.constant 0 : index
    %176 = vector.load %arg9[%c0_58, %c0_59] : memref<32x32xf32, #tpu.memory_space<vmem>>, vector<32x32xf32>
    %cst_60 = arith.constant dense<0.000000e+00> : vector<16x32xf32>
    %177 = tpu.matmul %175, %176, %cst_60 {dimension_numbers = #tpu.dot_dimension_numbers<[1], [0], [0], [1], [0, 0, 1, 1], [], []>} : vector<16x32xf32>, vector<32x32xf32>, vector<16x32xf32> -> vector<16x32xf32>
    %c0_61 = arith.constant 0 : index
    %c0_62 = arith.constant 0 : index
    %178 = vector.load %arg10[%c0_61, %c0_62] : memref<1x32xf32, #tpu.memory_space<vmem>>, vector<1x32xf32>
    %179 = vector.broadcast %178 : vector<1x32xf32> to vector<16x32xf32>
    %180 = arith.addf %177, %179 : vector<16x32xf32>
    %181 = arith.addf %0, %180 : vector<16x32xf32>
    %c0_63 = arith.constant 0 : index
    %c0_64 = arith.constant 0 : index
    %182 = vector.load %arg11[%c0_63, %c0_64] : memref<1x32xf32, #tpu.memory_space<vmem>>, vector<1x32xf32>
    %c0_65 = arith.constant 0 : index
    %c0_66 = arith.constant 0 : index
    %183 = vector.load %arg12[%c0_65, %c0_66] : memref<1x32xf32, #tpu.memory_space<vmem>>, vector<1x32xf32>
    %cst_67 = arith.constant dense<0.000000e+00> : vector<16xf32>
    %184 = vector.multi_reduction <add>, %181, %cst_67 [1] : vector<16x32xf32> to vector<16xf32>
    %185 = vector.shape_cast %184 : vector<16xf32> to vector<16x1xf32>
    %cst_68 = arith.constant 3.200000e+01 : f32
    %186 = vector.broadcast %cst_68 : f32 to vector<16x1xf32>
    %187 = arith.divf %185, %186 : vector<16x1xf32>
    %188 = vector.broadcast %187 : vector<16x1xf32> to vector<16x32xf32>
    %189 = arith.subf %181, %188 : vector<16x32xf32>
    %190 = arith.mulf %189, %189 : vector<16x32xf32>
    %cst_69 = arith.constant dense<0.000000e+00> : vector<16xf32>
    %191 = vector.multi_reduction <add>, %190, %cst_69 [1] : vector<16x32xf32> to vector<16xf32>
    %192 = vector.shape_cast %191 : vector<16xf32> to vector<16x1xf32>
    %cst_70 = arith.constant 0.0322580636 : f32
    %193 = vector.broadcast %cst_70 : f32 to vector<16x1xf32>
    %194 = arith.mulf %192, %193 : vector<16x1xf32>
    %195 = math.sqrt %194 : vector<16x1xf32>
    %cst_71 = arith.constant 9.99999997E-7 : f32
    %196 = vector.broadcast %cst_71 : f32 to vector<16x1xf32>
    %197 = arith.addf %195, %196 : vector<16x1xf32>
    %198 = tpu.reciprocal %197 {approx = true} : vector<16x1xf32> -> vector<16x1xf32>
    %199 = vector.broadcast %187 : vector<16x1xf32> to vector<16x32xf32>
    %200 = arith.subf %181, %199 : vector<16x32xf32>
    %201 = vector.broadcast %182 : vector<1x32xf32> to vector<16x32xf32>
    %202 = arith.mulf %201, %200 : vector<16x32xf32>
    %203 = vector.broadcast %198 : vector<16x1xf32> to vector<16x32xf32>
    %204 = arith.mulf %202, %203 : vector<16x32xf32>
    %205 = vector.broadcast %183 : vector<1x32xf32> to vector<16x32xf32>
    %206 = arith.addf %204, %205 : vector<16x32xf32>
    %c0_72 = arith.constant 0 : index
    %c0_73 = arith.constant 0 : index
    %207 = vector.load %arg13[%c0_72, %c0_73] : memref<32x64xf32, #tpu.memory_space<vmem>>, vector<32x64xf32>
    %cst_74 = arith.constant dense<0.000000e+00> : vector<16x64xf32>
    %208 = tpu.matmul %206, %207, %cst_74 {dimension_numbers = #tpu.dot_dimension_numbers<[1], [0], [0], [1], [0, 0, 1, 1], [], []>} : vector<16x32xf32>, vector<32x64xf32>, vector<16x64xf32> -> vector<16x64xf32>
    %c0_75 = arith.constant 0 : index
    %c0_76 = arith.constant 0 : index
    %209 = vector.load %arg14[%c0_75, %c0_76] : memref<1x64xf32, #tpu.memory_space<vmem>>, vector<1x64xf32>
    %210 = vector.broadcast %209 : vector<1x64xf32> to vector<16x64xf32>
    %211 = arith.addf %208, %210 : vector<16x64xf32>
    %cst_77 = arith.constant 5.000000e-01 : f32
    %212 = vector.broadcast %cst_77 : f32 to vector<16x64xf32>
    %213 = arith.mulf %212, %211 : vector<16x64xf32>
    %214 = arith.mulf %211, %211 : vector<16x64xf32>
    %215 = arith.mulf %214, %211 : vector<16x64xf32>
    %cst_78 = arith.constant 4.471500e-02 : f32
    %216 = vector.broadcast %cst_78 : f32 to vector<16x64xf32>
    %217 = arith.mulf %216, %215 : vector<16x64xf32>
    %218 = arith.addf %211, %217 : vector<16x64xf32>
    %cst_79 = arith.constant 0.797884583 : f32
    %219 = vector.broadcast %cst_79 : f32 to vector<16x64xf32>
    %220 = arith.mulf %219, %218 : vector<16x64xf32>
    %221 = math.tanh %220 : vector<16x64xf32>
    %cst_80 = arith.constant 1.000000e+00 : f32
    %222 = vector.broadcast %cst_80 : f32 to vector<16x64xf32>
    %223 = arith.addf %222, %221 : vector<16x64xf32>
    %224 = arith.mulf %213, %223 : vector<16x64xf32>
    %c0_81 = arith.constant 0 : index
    %c0_82 = arith.constant 0 : index
    %225 = vector.load %arg15[%c0_81, %c0_82] : memref<64x32xf32, #tpu.memory_space<vmem>>, vector<64x32xf32>
    %cst_83 = arith.constant dense<0.000000e+00> : vector<16x32xf32>
    %226 = tpu.matmul %224, %225, %cst_83 {dimension_numbers = #tpu.dot_dimension_numbers<[1], [0], [0], [1], [0, 0, 1, 1], [], []>} : vector<16x64xf32>, vector<64x32xf32>, vector<16x32xf32> -> vector<16x32xf32>
    %c0_84 = arith.constant 0 : index
    %c0_85 = arith.constant 0 : index
    %227 = vector.load %arg16[%c0_84, %c0_85] : memref<1x32xf32, #tpu.memory_space<vmem>>, vector<1x32xf32>
    %228 = vector.broadcast %227 : vector<1x32xf32> to vector<16x32xf32>
    %229 = arith.addf %226, %228 : vector<16x32xf32>
    %230 = arith.addf %181, %229 : vector<16x32xf32>
    %c0_86 = arith.constant 0 : index
    %c0_87 = arith.constant 0 : index
    %231 = vector.load %arg17[%c0_86, %c0_87] : memref<16x32xf32, #tpu.memory_space<vmem>>, vector<16x32xf32>
    tpu.vector_store %arg17[%c0_86, %c0_87], %230 {strides = array<i32>} : memref<16x32xf32, #tpu.memory_space<vmem>>, vector<16x32xf32>,
    return
  }
  func.func @transform_0(%arg0: i32) -> (i32, i32) {
    %c0_i32 = arith.constant 0 : i32
    %c0_i32_0 = arith.constant 0 : i32
    %c0_i32_1 = arith.constant 0 : i32
    return %c0_i32, %c0_i32_0 : i32, i32
  }
  func.func @transform_1(%arg0: i32) -> (i32, i32) {
    %c0_i32 = arith.constant 0 : i32
    %c0_i32_0 = arith.constant 0 : i32
    %c0_i32_1 = arith.constant 0 : i32
    return %c0_i32, %c0_i32_0 : i32, i32
  }
  func.func @transform_2(%arg0: i32) -> (i32, i32) {
    %c0_i32 = arith.constant 0 : i32
    %c0_i32_0 = arith.constant 0 : i32
    %c0_i32_1 = arith.constant 0 : i32
    return %c0_i32, %c0_i32_0 : i32, i32
  }
  func.func @transform_3(%arg0: i32) -> (i32, i32) {
    %c0_i32 = arith.constant 0 : i32
    %c0_i32_0 = arith.constant 0 : i32
    %c0_i32_1 = arith.constant 0 : i32
    return %c0_i32, %c0_i32_0 : i32, i32
  }
  func.func @transform_4(%arg0: i32) -> (i32, i32) {
    %c0_i32 = arith.constant 0 : i32
    %c0_i32_0 = arith.constant 0 : i32
    %c0_i32_1 = arith.constant 0 : i32
    return %c0_i32, %c0_i32_0 : i32, i32
  }
  func.func @transform_5(%arg0: i32) -> (i32, i32) {
    %c0_i32 = arith.constant 0 : i32
    %c0_i32_0 = arith.constant 0 : i32
    %c0_i32_1 = arith.constant 0 : i32
    return %c0_i32, %c0_i32_0 : i32, i32
  }
  func.func @transform_6(%arg0: i32) -> (i32, i32) {
    %c0_i32 = arith.constant 0 : i32
    %c0_i32_0 = arith.constant 0 : i32
    %c0_i32_1 = arith.constant 0 : i32
    return %c0_i32, %c0_i32_0 : i32, i32
  }
  func.func @transform_7(%arg0: i32) -> (i32, i32) {
    %c0_i32 = arith.constant 0 : i32
    %c0_i32_0 = arith.constant 0 : i32
    %c0_i32_1 = arith.constant 0 : i32
    return %c0_i32, %c0_i32_0 : i32, i32
  }
  func.func @transform_8(%arg0: i32) -> (i32, i32) {
    %c0_i32 = arith.constant 0 : i32
    %c0_i32_0 = arith.constant 0 : i32
    %c0_i32_1 = arith.constant 0 : i32
    return %c0_i32, %c0_i32_0 : i32, i32
  }
  func.func @transform_9(%arg0: i32) -> (i32, i32) {
    %c0_i32 = arith.constant 0 : i32
    %c0_i32_0 = arith.constant 0 : i32
    %c0_i32_1 = arith.constant 0 : i32
    return %c0_i32, %c0_i32_0 : i32, i32
  }
  func.func @transform_10(%arg0: i32) -> (i32, i32) {
    %c0_i32 = arith.constant 0 : i32
    %c0_i32_0 = arith.constant 0 : i32
    %c0_i32_1 = arith.constant 0 : i32
    return %c0_i32, %c0_i32_0 : i32, i32
  }
  func.func @transform_11(%arg0: i32) -> (i32, i32) {
    %c0_i32 = arith.constant 0 : i32
    %c0_i32_0 = arith.constant 0 : i32
    %c0_i32_1 = arith.constant 0 : i32
    return %c0_i32, %c0_i32_0 : i32, i32
  }
  func.func @transform_12(%arg0: i32) -> (i32, i32) {
    %c0_i32 = arith.constant 0 : i32
    %c0_i32_0 = arith.constant 0 : i32
    %c0_i32_1 = arith.constant 0 : i32
    return %c0_i32, %c0_i32_0 : i32, i32
  }
  func.func @transform_13(%arg0: i32) -> (i32, i32) {
    %c0_i32 = arith.constant 0 : i32
    %c0_i32_0 = arith.constant 0 : i32
    %c0_i32_1 = arith.constant 0 : i32
    return %c0_i32, %c0_i32_0 : i32, i32
  }
  func.func @transform_14(%arg0: i32) -> (i32, i32) {
    %c0_i32 = arith.constant 0 : i32
    %c0_i32_0 = arith.constant 0 : i32
    %c0_i32_1 = arith.constant 0 : i32
    return %c0_i32, %c0_i32_0 : i32, i32
  }
  func.func @transform_15(%arg0: i32) -> (i32, i32) {
    %c0_i32 = arith.constant 0 : i32
    %c0_i32_0 = arith.constant 0 : i32
    %c0_i32_1 = arith.constant 0 : i32
    return %c0_i32, %c0_i32_0 : i32, i32
  }
  func.func @transform_16(%arg0: i32) -> (i32, i32) {
    %c0_i32 = arith.constant 0 : i32
    %c0_i32_0 = arith.constant 0 : i32
    %c0_i32_1 = arith.constant 0 : i32
    return %c0_i32, %c0_i32_0 : i32, i32
  }
}

</mosaic_0001>

<llo_original>
// kernel: locker_transformer_block.1
$region0: #{locker_transformer_block.1}
  #allocation0 [shape = 'u32[]', space=smem, size = 0x4, offset = 0x4, fixed_abs, tag = 'smem constant byte address 0x4 - core index']
  #allocation1 [shape = 'u32[72,128]{1,0:T(1,128)}', space=vmem, size = 0x9000, scoped, tag = 'internal scratch']
  %s0 = inlined_call_operand.vmem [shape: f32[16,32], index: 0, kind: input, shape index: {}]
  %s1 = inlined_call_operand.vmem [shape: f32[16,8], index: 1, kind: input, shape index: {}]
  %s2 = inlined_call_operand.vmem [shape: f32[1,32], index: 2, kind: input, shape index: {}]
  %s3 = inlined_call_operand.vmem [shape: f32[1,32], index: 3, kind: input, shape index: {}]
  %s4 = inlined_call_operand.vmem [shape: f32[32,96], index: 4, kind: input, shape index: {}]
  %s5 = inlined_call_operand.vmem [shape: f32[1,96], index: 5, kind: input, shape index: {}]
  %s6 = inlined_call_operand.vmem [shape: f32[24,8], index: 6, kind: input, shape index: {}]
  %s7 = inlined_call_operand.vmem [shape: f32[1,8], index: 7, kind: input, shape index: {}]
  %s8 = inlined_call_operand.vmem [shape: f32[32,32], index: 8, kind: input, shape index: {}]
  %s9 = inlined_call_operand.vmem [shape: f32[1,32], index: 9, kind: input, shape index: {}]
  %s10 = inlined_call_operand.vmem [shape: f32[1,32], index: 10, kind: input, shape index: {}]
  %s11 = inlined_call_operand.vmem [shape: f32[1,32], index: 11, kind: input, shape index: {}]
  %s12 = inlined_call_operand.vmem [shape: f32[32,64], index: 12, kind: input, shape index: {}]
  %s13 = inlined_call_operand.vmem [shape: f32[1,64], index: 13, kind: input, shape index: {}]
  %s14 = inlined_call_operand.vmem [shape: f32[64,32], index: 14, kind: input, shape index: {}]
  %s15 = inlined_call_operand.vmem [shape: f32[1,32], index: 15, kind: input, shape index: {}]
  %s16 = inlined_call_operand.hbm [shape: f32[16,32], index: 16, kind: output, shape index: {}]
  %s17 = sld [smem:[#allocation0]]
  $region74: #{locker_transformer_block.1} parent=0
    _
  %s19 = ssub.s32 1, %s17
  %s20 = scalar_select 0, %s19, %s17
  $region1: #{locker_transformer_block.1} parent=0
    #allocation2 [shape = 'u8[8192]{0}', space=vmem, size = 0x2000, scoped, tag = 'output window, operand 0, single buffered']
    #allocation3 [shape = 's32[1]{0}', space=sflag, size = 0x4, scoped, tag = 'scoped memory for locker_transformer_block.1']
    %21 = vsyncpa [#allocation3], 0
    // Predicated region
    $region2: #{locker_transformer_block.1} parent=1 // pred_check
      _
    $region3: #{locker_transformer_block.1} parent=1 // pred_check_branch
      %23 = sbr.rel (0) target = $region5
    $region4: #{locker_transformer_block.1} parent=1 // pred_region
      _
    $region5: #{locker_transformer_block.1} parent=1 // pred_fallthru
      _
    // Predicated region
    $region6: #{locker_transformer_block.1} parent=1 // pred_check
      _
    $region7: #{locker_transformer_block.1} parent=1 // pred_check_branch
      %25 = sbr.rel (0) target = $region9
    $region8: #{locker_transformer_block.1} parent=1 // pred_region
      _
    $region9: #{locker_transformer_block.1} parent=1 // pred_fallthru
      _
    // Predicated region
    $region10: #{locker_transformer_block.1} parent=1 // pred_check
      _
    $region11: #{locker_transformer_block.1} parent=1 // pred_check_branch
      %27 = sbr.rel (0) target = $region13
    $region12: #{locker_transformer_block.1} parent=1 // pred_region
      _
    $region13: #{locker_transformer_block.1} parent=1 // pred_fallthru
      _
    // Predicated region
    $region14: #{locker_transformer_block.1} parent=1 // pred_check
      _
    $region15: #{locker_transformer_block.1} parent=1 // pred_check_branch
      %29 = sbr.rel (0) target = $region17
    $region16: #{locker_transformer_block.1} parent=1 // pred_region
      _
    $region17: #{locker_transformer_block.1} parent=1 // pred_fallthru
      _
    // Predicated region
    $region18: #{locker_transformer_block.1} parent=1 // pred_check
      _
    $region19: #{locker_transformer_block.1} parent=1 // pred_check_branch
      %31 = sbr.rel (0) target = $region21
    $region20: #{locker_transformer_block.1} parent=1 // pred_region
      _
    $region21: #{locker_transformer_block.1} parent=1 // pred_fallthru
      _
    // Predicated region
    $region22: #{locker_transformer_block.1} parent=1 // pred_check
      _
    $region23: #{locker_transformer_block.1} parent=1 // pred_check_branch
      %33 = sbr.rel (0) target = $region25
    $region24: #{locker_transformer_block.1} parent=1 // pred_region
      _
    $region25: #{locker_transformer_block.1} parent=1 // pred_fallthru
      _
    // Predicated region
    $region26: #{locker_transformer_block.1} parent=1 // pred_check
      _
    $region27: #{locker_transformer_block.1} parent=1 // pred_check_branch
      %35 = sbr.rel (0) target = $region29
    $region28: #{locker_transformer_block.1} parent=1 // pred_region
      _
    $region29: #{locker_transformer_block.1} parent=1 // pred_fallthru
      _
    // Predicated region
    $region30: #{locker_transformer_block.1} parent=1 // pred_check
      _
    $region31: #{locker_transformer_block.1} parent=1 // pred_check_branch
      %37 = sbr.rel (0) target = $region33
    $region32: #{locker_transformer_block.1} parent=1 // pred_region
      _
    $region33: #{locker_transformer_block.1} parent=1 // pred_fallthru
      _
    // Predicated region
    $region34: #{locker_transformer_block.1} parent=1 // pred_check
      _
    $region35: #{locker_transformer_block.1} parent=1 // pred_check_branch
      %39 = sbr.rel (0) target = $region37
    $region36: #{locker_transformer_block.1} parent=1 // pred_region
      _
    $region37: #{locker_transformer_block.1} parent=1 // pred_fallthru
      _
    // Predicated region
    $region38: #{locker_transformer_block.1} parent=1 // pred_check
      _
    $region39: #{locker_transformer_block.1} parent=1 // pred_check_branch
      %41 = sbr.rel (0) target = $region41
    $region40: #{locker_transformer_block.1} parent=1 // pred_region
      _
    $region41: #{locker_transformer_block.1} parent=1 // pred_fallthru
      _
    // Predicated region
    $region42: #{locker_transformer_block.1} parent=1 // pred_check
      _
    $region43: #{locker_transformer_block.1} parent=1 // pred_check_branch
      %43 = sbr.rel (0) target = $region45
    $region44: #{locker_transformer_block.1} parent=1 // pred_region
      _
    $region45: #{locker_transformer_block.1} parent=1 // pred_fallthru
      _
    // Predicated region
    $region46: #{locker_transformer_block.1} parent=1 // pred_check
      _
    $region47: #{locker_transformer_block.1} parent=1 // pred_check_branch
      %45 = sbr.rel (0) target = $region49
    $region48: #{locker_transformer_block.1} parent=1 // pred_region
      _
    $region49: #{locker_transformer_block.1} parent=1 // pred_fallthru
      _
    // Predicated region
    $region50: #{locker_transformer_block.1} parent=1 // pred_check
      _
    $region51: #{locker_transformer_block.1} parent=1 // pred_check_branch
      %47 = sbr.rel (0) target = $region53
    $region52: #{locker_transformer_block.1} parent=1 // pred_region
      _
    $region53: #{locker_transformer_block.1} parent=1 // pred_fallthru
      _
    // Predicated region
    $region54: #{locker_transformer_block.1} parent=1 // pred_check
      _
    $region55: #{locker_transformer_block.1} parent=1 // pred_check_branch
      %49 = sbr.rel (0) target = $region57
    $region56: #{locker_transformer_block.1} parent=1 // pred_region
      _
    $region57: #{locker_transformer_block.1} parent=1 // pred_fallthru
      _
    // Predicated region
    $region58: #{locker_transformer_block.1} parent=1 // pred_check
      _
    $region59: #{locker_transformer_block.1} parent=1 // pred_check_branch
      %51 = sbr.rel (0) target = $region61
    $region60: #{locker_transformer_block.1} parent=1 // pred_region
      _
    $region61: #{locker_transformer_block.1} parent=1 // pred_fallthru
      _
    // Predicated region
    $region62: #{locker_transformer_block.1} parent=1 // pred_check
      _
    $region63: #{locker_transformer_block.1} parent=1 // pred_check_branch
      %53 = sbr.rel (0) target = $region65
    $region64: #{locker_transformer_block.1} parent=1 // pred_region
      _
    $region65: #{locker_transformer_block.1} parent=1 // pred_fallthru
      _
    %v54 = vld [vmem:[%s0] sm:$0xff]
    %v55 = vld [vmem:[%s0 + $0x8] sm:$0xff]
    %v56 = vld [vmem:[%s1] sm:$0xff]
    %v57 = vld [vmem:[%s1 + $0x8] sm:$0xff]
    %v58 = vld [vmem:[%s6] sm:$0xff]
    %v59 = vld [vmem:[%s6 + $0x8] sm:$0xff]
    %v60 = vld [vmem:[%s6 + $0x10] sm:$0xff]
    %v61 = vld [vmem:[%s7] sm:$0x1]
    %v62 = vld [vmem:[%s2] sm:$0x1]
    %v63 = vld [vmem:[%s3] sm:$0x1]
    %vm64 = vcmask 261120
    %v65 = vsel %vm64, %v54, 0.0
    %66 = vadd.xlane.f32.xlu0 %v65
    %v67 = vpop.xlane.xlu0 %66
    %v68 = vsel %vm64, %v55, 0.0
    %69 = vadd.xlane.f32.xlu0 %v68
    %v70 = vpop.xlane.xlu0 %69
    %v71 = vrcp.pop 32.0
    %v72 = vmul.f32 32.0, %v71
    %v73 = vsub.f32 1.0, %v72
    %v74 = vmul.f32 %v71, %v73
    %v75 = vadd.f32 %v71, %v74
    %vm76 = vweird.f32 %v71
    %v77 = vsel %vm76, %v71, %v75
    %v78 = vmul.f32 %v67, %v77
    %v79 = vmul.f32 %v70, %v77
    %v80 = vsub.f32 %v54, %v78
    %v81 = vsub.f32 %v55, %v79
    %v82 = vmul.f32 %v80, %v80
    %v83 = vmul.f32 %v81, %v81
    %v84 = vsel %vm64, %v82, 0.0
    %85 = vadd.xlane.f32.xlu0 %v84
    %v86 = vpop.xlane.xlu0 %85
    %v87 = vsel %vm64, %v83, 0.0
    %88 = vadd.xlane.f32.xlu0 %v87
    %v89 = vpop.xlane.xlu0 %88
    %v90 = vmul.f32 %v86, 0.032258064
    %v91 = vmul.f32 %v89, 0.032258064
    %v92 = vrsqrt.pop %v90
    %v93 = vmul.f32 %v92, %v90
    %v94 = vmul.f32 %v93, %v92
    %v95 = vmul.f32 0.5, %v94
    %v96 = vsub.f32 1.5, %v95
    %v97 = vmul.f32 %v92, %v96
    %v98 = vmul.f32 %v90, %v97
    %vm99 = vcmp.eq.f32.partialorder %v90, inf
    %v100 = vsel %vm99, %v90, %v98
    %vm101 = vcmp.eq.f32.partialorder %v90, 0.0
    %v102 = vand.u32 %v90, 2147483648
    %v103 = vsel %vm101, %v102, %v100
    %v104 = vrsqrt.pop %v91
    %v105 = vmul.f32 %v104, %v91
    %v106 = vmul.f32 %v105, %v104
    %v107 = vmul.f32 0.5, %v106
    %v108 = vsub.f32 1.5, %v107
    %v109 = vmul.f32 %v104, %v108
    %v110 = vmul.f32 %v91, %v109
    %vm111 = vcmp.eq.f32.partialorder %v91, inf
    %v112 = vsel %vm111, %v91, %v110
    %vm113 = vcmp.eq.f32.partialorder %v91, 0.0
    %v114 = vand.u32 %v91, 2147483648
    %v115 = vsel %vm113, %v114, %v112
    %v116 = vadd.f32 %v103, 1e-06
    %v117 = vadd.f32 %v115, 1e-06
    %v118 = vrcp.pop %v116
    %v119 = vrcp.pop %v117
    %v121 = vperm.slane %v62, 0
    %v123 = vmul.f32 %v121, %v80
    %v124 = vmul.f32 %v121, %v81
    %v125 = vmul.f32 %v123, %v118
    %v126 = vmul.f32 %v124, %v119
    %v128 = vperm.slane %v63, 0
    %v130 = vadd.f32 %v125, %v128
    %v131 = vadd.f32 %v126, %v128
    %v132 = vld [vmem:[%s4] sm:$0xff]
    %v133 = vld [vmem:[%s4 + $0x8] sm:$0xff]
    %v134 = vld [vmem:[%s4 + $0x10] sm:$0xff]
    %v135 = vld [vmem:[%s4 + $0x18] sm:$0xff]
    %v136 = vld [vmem:[%s5] sm:$0x1]
    %v138 = vperm.slane %v136, 0
    %v141 = vsel %vm64, %v130, 0
    %v144 = vsel %vm64, %v131, 0
    %146 = vmatpush.msra.mxu0 0.0
    %147 = vmatpush.msra.mxu0 0.0
    %148 = vmatpush.msra.mxu0 0.0
    %149 = vmatpush.msra.mxu0 0.0
    %150 = vmatpush.msra.mxu0 0.0
    %151 = vmatpush.msra.mxu0 0.0
    %152 = vmatpush.msra.mxu0 0.0
    %153 = vmatpush.msra.mxu0 0.0
    %154 = vmatpush.msra.mxu0 0.0
    %155 = vmatpush.msra.mxu0 0.0
    %156 = vmatpush.msra.mxu0 0.0
    %157 = vmatpush.msra.mxu0 0.0
    %158 = vmatpush.msra.mxu0 %v135
    %159 = vmatpush.msra.mxu0 %v134
    %160 = vmatpush.msra.mxu0 %v133
    %161 = vmatpush.msra.mxu0 %v132
    %162 = vmatmul.f32.gmra.mxu0 %v141
    %v163 = vpop.f32.mrf.mxu0
    %v164 = vadd.f32 %v138, %v163
    %165 = vmatmul.f32.gmra.mxu0 %v144
    %v166 = vpop.f32.mrf.mxu0
    %v167 = vadd.f32 %v138, %v166
    %168 = vdwg.mxu0
    %170 = vrot.lane.b32.xlu0 %v164, 96
    %v171 = vpop.permute.xlu0 %170
    %vm172 = vcmask 64512
    %v173 = vsel %vm172, %v164, 0
    %v175 = vsel %vm172, %v171, 0
    %177 = vmatpush.xpose.msra.mxu0 0.0
    %178 = vmatpush.xpose.msra.mxu0 0.0
    %179 = vmatpush.xpose.msra.mxu0 0.0
    %180 = vmatpush.xpose.msra.mxu0 0.0
    %181 = vmatpush.xpose.msra.mxu0 0.0
    %182 = vmatpush.xpose.msra.mxu0 0.0
    %183 = vmatpush.xpose.msra.mxu0 0.0
    %184 = vmatpush.xpose.msra.mxu0 0.0
    %185 = vmatpush.xpose.msra.mxu0 0.0
    %186 = vmatpush.xpose.msra.mxu0 0.0
    %187 = vmatpush.xpose.msra.mxu0 0.0
    %188 = vmatpush.xpose.msra.mxu0 0.0
    %189 = vmatpush.xpose.msra.mxu0 0.0
    %190 = vmatpush.xpose.msra.mxu0 0.0
    %191 = vmatpush.xpose.msra.mxu0 0.0
    %192 = vmatpush.xpose.msra.mxu0 %v175
    %193 = vmatmul.f32.gmra.mxu0 %v173
    %v194 = vpop.f32.mrf.mxu0
    %v195 = vadd.f32 0.0, %v194
    %196 = vdwg.mxu0
    %v197 = vmul.f32 %v195, 0.35355338
    %v198 = vadd.f32 %v197, %v56
    %v199 = vsel %vm172, %v198, -inf
    %200 = vmax.xlane.f32.xlu0 %v199
    %v201 = vpop.xlane.xlu0 %200
    %v202 = vsub.f32 %v198, %v201
    %v203 = vmul.f32 %v202, 1.442695
    %v204 = vpow.pop %v203
    %v205 = vsel %vm172, %v204, 0.0
    %206 = vadd.xlane.f32.xlu0 %v205
    %v207 = vpop.xlane.xlu0 %206
    %v208 = vrcp.pop %v207
    %v209 = vmul.f32 %v204, %v208
    %210 = vrot.lane.b32.xlu0 %v164, 64
    %v211 = vpop.permute.xlu0 %210
    %v214 = vsel %vm172, %v209, 0
    %216 = vmatpush.msra.mxu0 0.0
    %217 = vmatpush.msra.mxu0 0.0
    %218 = vmatpush.msra.mxu0 0.0
    %219 = vmatpush.msra.mxu0 0.0
    %220 = vmatpush.msra.mxu0 0.0
    %221 = vmatpush.msra.mxu0 0.0
    %222 = vmatpush.msra.mxu0 0.0
    %223 = vmatpush.msra.mxu0 0.0
    %224 = vmatpush.msra.mxu0 0.0
    %225 = vmatpush.msra.mxu0 0.0
    %226 = vmatpush.msra.mxu0 0.0
    %227 = vmatpush.msra.mxu0 0.0
    %228 = vmatpush.msra.mxu0 0.0
    %229 = vmatpush.msra.mxu0 0.0
    %230 = vmatpush.msra.mxu0 0.0
    %231 = vmatpush.msra.mxu0 %v211
    %232 = vmatmul.f32.gmra.mxu0 %v214
    %v233 = vpop.f32.mrf.mxu0
    %v234 = vadd.f32 0.0, %v233
    %235 = vdwg.mxu0
    %236 = vrot.lane.b32.xlu0 %v164, 120
    %v237 = vpop.permute.xlu0 %236
    %238 = vrot.lane.b32.xlu0 %v164, 88
    %v239 = vpop.permute.xlu0 %238
    %v240 = vsel %vm172, %v237, 0
    %v242 = vsel %vm172, %v239, 0
    %244 = vmatpush.xpose.msra.mxu0 0.0
    %245 = vmatpush.xpose.msra.mxu0 0.0
    %246 = vmatpush.xpose.msra.mxu0 0.0
    %247 = vmatpush.xpose.msra.mxu0 0.0
    %248 = vmatpush.xpose.msra.mxu0 0.0
    %249 = vmatpush.xpose.msra.mxu0 0.0
    %250 = vmatpush.xpose.msra.mxu0 0.0
    %251 = vmatpush.xpose.msra.mxu0 0.0
    %252 = vmatpush.xpose.msra.mxu0 0.0
    %253 = vmatpush.xpose.msra.mxu0 0.0
    %254 = vmatpush.xpose.msra.mxu0 0.0
    %255 = vmatpush.xpose.msra.mxu0 0.0
    %256 = vmatpush.xpose.msra.mxu0 0.0
    %257 = vmatpush.xpose.msra.mxu0 0.0
    %258 = vmatpush.xpose.msra.mxu0 0.0
    %259 = vmatpush.xpose.msra.mxu0 %v242
    %260 = vmatmul.f32.gmra.mxu0 %v240
    %v261 = vpop.f32.mrf.mxu0
    %v262 = vadd.f32 0.0, %v261
    %263 = vdwg.mxu0
    %v264 = vmul.f32 %v262, 0.35355338
    %v265 = vadd.f32 %v264, %v56
    %v266 = vsel %vm172, %v265, -inf
    %267 = vmax.xlane.f32.xlu0 %v266
    %v268 = vpop.xlane.xlu0 %267
    %v269 = vsub.f32 %v265, %v268
    %v270 = vmul.f32 %v269, 1.442695
    %v271 = vpow.pop %v270
    %v272 = vsel %vm172, %v271, 0.0
    %273 = vadd.xlane.f32.xlu0 %v272
    %v274 = vpop.xlane.xlu0 %273
    %v275 = vrcp.pop %v274
    %v276 = vmul.f32 %v271, %v275
    %277 = vrot.lane.b32.xlu0 %v164, 56
    %v278 = vpop.permute.xlu0 %277
    %v281 = vsel %vm172, %v276, 0
    %283 = vmatpush.msra.mxu0 0.0
    %284 = vmatpush.msra.mxu0 0.0
    %285 = vmatpush.msra.mxu0 0.0
    %286 = vmatpush.msra.mxu0 0.0
    %287 = vmatpush.msra.mxu0 0.0
    %288 = vmatpush.msra.mxu0 0.0
    %289 = vmatpush.msra.mxu0 0.0
    %290 = vmatpush.msra.mxu0 0.0
    %291 = vmatpush.msra.mxu0 0.0
    %292 = vmatpush.msra.mxu0 0.0
    %293 = vmatpush.msra.mxu0 0.0
    %294 = vmatpush.msra.mxu0 0.0
    %295 = vmatpush.msra.mxu0 0.0
    %296 = vmatpush.msra.mxu0 0.0
    %297 = vmatpush.msra.mxu0 0.0
    %298 = vmatpush.msra.mxu0 %v278
    %299 = vmatmul.f32.gmra.mxu0 %v281
    %v300 = vpop.f32.mrf.mxu0
    %v301 = vadd.f32 0.0, %v300
    %302 = vdwg.mxu0
    %303 = vrot.lane.b32.xlu0 %v164, 112
    %v304 = vpop.permute.xlu0 %303
    %305 = vrot.lane.b32.xlu0 %v164, 80
    %v306 = vpop.permute.xlu0 %305
    %v307 = vsel %vm172, %v304, 0
    %v309 = vsel %vm172, %v306, 0
    %311 = vmatpush.xpose.msra.mxu0 0.0
    %312 = vmatpush.xpose.msra.mxu0 0.0
    %313 = vmatpush.xpose.msra.mxu0 0.0
    %314 = vmatpush.xpose.msra.mxu0 0.0
    %315 = vmatpush.xpose.msra.mxu0 0.0
    %316 = vmatpush.xpose.msra.mxu0 0.0
    %317 = vmatpush.xpose.msra.mxu0 0.0
    %318 = vmatpush.xpose.msra.mxu0 0.0
    %319 = vmatpush.xpose.msra.mxu0 0.0
    %320 = vmatpush.xpose.msra.mxu0 0.0
    %321 = vmatpush.xpose.msra.mxu0 0.0
    %322 = vmatpush.xpose.msra.mxu0 0.0
    %323 = vmatpush.xpose.msra.mxu0 0.0
    %324 = vmatpush.xpose.msra.mxu0 0.0
    %325 = vmatpush.xpose.msra.mxu0 0.0
    %326 = vmatpush.xpose.msra.mxu0 %v309
    %327 = vmatmul.f32.gmra.mxu0 %v307
    %v328 = vpop.f32.mrf.mxu0
    %v329 = vadd.f32 0.0, %v328
    %330 = vdwg.mxu0
    %v331 = vmul.f32 %v329, 0.35355338
    %v332 = vadd.f32 %v331, %v56
    %v333 = vsel %vm172, %v332, -inf
    %334 = vmax.xlane.f32.xlu0 %v333
    %v335 = vpop.xlane.xlu0 %334
    %v336 = vsub.f32 %v332, %v335
    %v337 = vmul.f32 %v336, 1.442695
    %v338 = vpow.pop %v337
    %v339 = vsel %vm172, %v338, 0.0
    %340 = vadd.xlane.f32.xlu0 %v339
    %v341 = vpop.xlane.xlu0 %340
    %v342 = vrcp.pop %v341
    %v343 = vmul.f32 %v338, %v342
    %344 = vrot.lane.b32.xlu0 %v164, 48
    %v345 = vpop.permute.xlu0 %344
    %v348 = vsel %vm172, %v343, 0
    %350 = vmatpush.msra.mxu0 0.0
    %351 = vmatpush.msra.mxu0 0.0
    %352 = vmatpush.msra.mxu0 0.0
    %353 = vmatpush.msra.mxu0 0.0
    %354 = vmatpush.msra.mxu0 0.0
    %355 = vmatpush.msra.mxu0 0.0
    %356 = vmatpush.msra.mxu0 0.0
    %357 = vmatpush.msra.mxu0 0.0
    %358 = vmatpush.msra.mxu0 0.0
    %359 = vmatpush.msra.mxu0 0.0
    %360 = vmatpush.msra.mxu0 0.0
    %361 = vmatpush.msra.mxu0 0.0
    %362 = vmatpush.msra.mxu0 0.0
    %363 = vmatpush.msra.mxu0 0.0
    %364 = vmatpush.msra.mxu0 0.0
    %365 = vmatpush.msra.mxu0 %v345
    %366 = vmatmul.f32.gmra.mxu0 %v348
    %v367 = vpop.f32.mrf.mxu0
    %v368 = vadd.f32 0.0, %v367
    %369 = vdwg.mxu0
    %v370 = vrot.slane %v164, 7
    %371 = vrot.lane.b32.xlu0 %v370, 40
    %v372 = vpop.permute.xlu0 %371
    %vm374 = vcmask 1040384
    %v375 = vsel %vm374, 0.0, %v372
    %v376 = vrot.slane %v164, 1
    %vm378 = vcmask 1046528
    %v379 = vsel %vm378, %v376, 0.0
    %381 = vrot.lane.b32.xlu0 %v379, 56
    %v382 = vpop.permute.xlu0 %381
    %v384 = vsel %vm172, %v375, %v345
    %vm385 = vcmask 130048
    %v386 = vsel %vm385, %v384, %v382
    %v388 = vperm.slane %v61, 0
    %vm390 = vcmask 195584
    %v392 = vsel %vm390, %v386, 0
    %394 = vmatpush.msra.mxu0 0.0
    %395 = vmatpush.msra.mxu0 0.0
    %396 = vmatpush.msra.mxu0 0.0
    %397 = vmatpush.msra.mxu0 0.0
    %398 = vmatpush.msra.mxu0 0.0
    %399 = vmatpush.msra.mxu0 0.0
    %400 = vmatpush.msra.mxu0 0.0
    %401 = vmatpush.msra.mxu0 0.0
    %402 = vmatpush.msra.mxu0 0.0
    %403 = vmatpush.msra.mxu0 0.0
    %404 = vmatpush.msra.mxu0 0.0
    %405 = vmatpush.msra.mxu0 0.0
    %406 = vmatpush.msra.mxu0 0.0
    %407 = vmatpush.msra.mxu0 %v60
    %408 = vmatpush.msra.mxu0 %v59
    %409 = vmatpush.msra.mxu0 %v58
    %410 = vmatmul.f32.gmra.mxu0 %v392
    %v411 = vpop.f32.mrf.mxu0
    %v412 = vadd.f32 %v388, %v411
    %413 = vdwg.mxu0
    %v414 = vmax.f32 %v412, 0.0
    %416 = vrot.lane.b32.xlu0 %v301, 8
    %v417 = vpop.permute.xlu0 %416
    %420 = vrot.lane.b32.xlu0 %v368, 16
    %v421 = vpop.permute.xlu0 %420
    %424 = vrot.lane.b32.xlu0 %v414, 24
    %v425 = vpop.permute.xlu0 %424
    %v427 = vsel %vm172, %v234, %v417
    %v428 = vsel %vm385, %v427, %v421
    %v429 = vsel %vm390, %v428, %v425
    %431 = vrot.lane.b32.xlu0 %v167, 96
    %v432 = vpop.permute.xlu0 %431
    %v433 = vsel %vm172, %v167, 0
    %v435 = vsel %vm172, %v432, 0
    %437 = vmatpush.xpose.msra.mxu0 0.0
    %438 = vmatpush.xpose.msra.mxu0 0.0
    %439 = vmatpush.xpose.msra.mxu0 0.0
    %440 = vmatpush.xpose.msra.mxu0 0.0
    %441 = vmatpush.xpose.msra.mxu0 0.0
    %442 = vmatpush.xpose.msra.mxu0 0.0
    %443 = vmatpush.xpose.msra.mxu0 0.0
    %444 = vmatpush.xpose.msra.mxu0 0.0
    %445 = vmatpush.xpose.msra.mxu0 0.0
    %446 = vmatpush.xpose.msra.mxu0 0.0
    %447 = vmatpush.xpose.msra.mxu0 0.0
    %448 = vmatpush.xpose.msra.mxu0 0.0
    %449 = vmatpush.xpose.msra.mxu0 0.0
    %450 = vmatpush.xpose.msra.mxu0 0.0
    %451 = vmatpush.xpose.msra.mxu0 0.0
    %452 = vmatpush.xpose.msra.mxu0 %v435
    %453 = vmatmul.f32.gmra.mxu0 %v433
    %v454 = vpop.f32.mrf.mxu0
    %v455 = vadd.f32 0.0, %v454
    %456 = vdwg.mxu0
    %v457 = vmul.f32 %v455, 0.35355338
    %v458 = vadd.f32 %v457, %v57
    %v459 = vsel %vm172, %v458, -inf
    %460 = vmax.xlane.f32.xlu0 %v459
    %v461 = vpop.xlane.xlu0 %460
    %v462 = vsub.f32 %v458, %v461
    %v463 = vmul.f32 %v462, 1.442695
    %v464 = vpow.pop %v463
    %v465 = vsel %vm172, %v464, 0.0
    %466 = vadd.xlane.f32.xlu0 %v465
    %v467 = vpop.xlane.xlu0 %466
    %v468 = vrcp.pop %v467
    %v469 = vmul.f32 %v464, %v468
    %470 = vrot.lane.b32.xlu0 %v167, 64
    %v471 = vpop.permute.xlu0 %470
    %v474 = vsel %vm172, %v469, 0
    %476 = vmatpush.msra.mxu0 0.0
    %477 = vmatpush.msra.mxu0 0.0
    %478 = vmatpush.msra.mxu0 0.0
    %479 = vmatpush.msra.mxu0 0.0
    %480 = vmatpush.msra.mxu0 0.0
    %481 = vmatpush.msra.mxu0 0.0
    %482 = vmatpush.msra.mxu0 0.0
    %483 = vmatpush.msra.mxu0 0.0
    %484 = vmatpush.msra.mxu0 0.0
    %485 = vmatpush.msra.mxu0 0.0
    %486 = vmatpush.msra.mxu0 0.0
    %487 = vmatpush.msra.mxu0 0.0
    %488 = vmatpush.msra.mxu0 0.0
    %489 = vmatpush.msra.mxu0 0.0
    %490 = vmatpush.msra.mxu0 0.0
    %491 = vmatpush.msra.mxu0 %v471
    %492 = vmatmul.f32.gmra.mxu0 %v474
    %v493 = vpop.f32.mrf.mxu0
    %v494 = vadd.f32 0.0, %v493
    %495 = vdwg.mxu0
    %496 = vrot.lane.b32.xlu0 %v167, 120
    %v497 = vpop.permute.xlu0 %496
    %498 = vrot.lane.b32.xlu0 %v167, 88
    %v499 = vpop.permute.xlu0 %498
    %v500 = vsel %vm172, %v497, 0
    %v502 = vsel %vm172, %v499, 0
    %504 = vmatpush.xpose.msra.mxu0 0.0
    %505 = vmatpush.xpose.msra.mxu0 0.0
    %506 = vmatpush.xpose.msra.mxu0 0.0
    %507 = vmatpush.xpose.msra.mxu0 0.0
    %508 = vmatpush.xpose.msra.mxu0 0.0
    %509 = vmatpush.xpose.msra.mxu0 0.0
    %510 = vmatpush.xpose.msra.mxu0 0.0
    %511 = vmatpush.xpose.msra.mxu0 0.0
    %512 = vmatpush.xpose.msra.mxu0 0.0
    %513 = vmatpush.xpose.msra.mxu0 0.0
    %514 = vmatpush.xpose.msra.mxu0 0.0
    %515 = vmatpush.xpose.msra.mxu0 0.0
    %516 = vmatpush.xpose.msra.mxu0 0.0
    %517 = vmatpush.xpose.msra.mxu0 0.0
    %518 = vmatpush.xpose.msra.mxu0 0.0
    %519 = vmatpush.xpose.msra.mxu0 %v502
    %520 = vmatmul.f32.gmra.mxu0 %v500
    %v521 = vpop.f32.mrf.mxu0
    %v522 = vadd.f32 0.0, %v521
    %523 = vdwg.mxu0
    %v524 = vmul.f32 %v522, 0.35355338
    %v525 = vadd.f32 %v524, %v57
    %v526 = vsel %vm172, %v525, -inf
    %527 = vmax.xlane.f32.xlu0 %v526
    %v528 = vpop.xlane.xlu0 %527
    %v529 = vsub.f32 %v525, %v528
    %v530 = vmul.f32 %v529, 1.442695
    %v531 = vpow.pop %v530
    %v532 = vsel %vm172, %v531, 0.0
    %533 = vadd.xlane.f32.xlu0 %v532
    %v534 = vpop.xlane.xlu0 %533
    %v535 = vrcp.pop %v534
    %v536 = vmul.f32 %v531, %v535
    %537 = vrot.lane.b32.xlu0 %v167, 56
    %v538 = vpop.permute.xlu0 %537
    %v541 = vsel %vm172, %v536, 0
    %543 = vmatpush.msra.mxu0 0.0
    %544 = vmatpush.msra.mxu0 0.0
    %545 = vmatpush.msra.mxu0 0.0
    %546 = vmatpush.msra.mxu0 0.0
    %547 = vmatpush.msra.mxu0 0.0
    %548 = vmatpush.msra.mxu0 0.0
    %549 = vmatpush.msra.mxu0 0.0
    %550 = vmatpush.msra.mxu0 0.0
    %551 = vmatpush.msra.mxu0 0.0
    %552 = vmatpush.msra.mxu0 0.0
    %553 = vmatpush.msra.mxu0 0.0
    %554 = vmatpush.msra.mxu0 0.0
    %555 = vmatpush.msra.mxu0 0.0
    %556 = vmatpush.msra.mxu0 0.0
    %557 = vmatpush.msra.mxu0 0.0
    %558 = vmatpush.msra.mxu0 %v538
    %559 = vmatmul.f32.gmra.mxu0 %v541
    %v560 = vpop.f32.mrf.mxu0
    %v561 = vadd.f32 0.0, %v560
    %562 = vdwg.mxu0
    %563 = vrot.lane.b32.xlu0 %v167, 112
    %v564 = vpop.permute.xlu0 %563
    %565 = vrot.lane.b32.xlu0 %v167, 80
    %v566 = vpop.permute.xlu0 %565
    %v567 = vsel %vm172, %v564, 0
    %v569 = vsel %vm172, %v566, 0
    %571 = vmatpush.xpose.msra.mxu0 0.0
    %572 = vmatpush.xpose.msra.mxu0 0.0
    %573 = vmatpush.xpose.msra.mxu0 0.0
    %574 = vmatpush.xpose.msra.mxu0 0.0
    %575 = vmatpush.xpose.msra.mxu0 0.0
    %576 = vmatpush.xpose.msra.mxu0 0.0
    %577 = vmatpush.xpose.msra.mxu0 0.0
    %578 = vmatpush.xpose.msra.mxu0 0.0
    %579 = vmatpush.xpose.msra.mxu0 0.0
    %580 = vmatpush.xpose.msra.mxu0 0.0
    %581 = vmatpush.xpose.msra.mxu0 0.0
    %582 = vmatpush.xpose.msra.mxu0 0.0
    %583 = vmatpush.xpose.msra.mxu0 0.0
    %584 = vmatpush.xpose.msra.mxu0 0.0
    %585 = vmatpush.xpose.msra.mxu0 0.0
    %586 = vmatpush.xpose.msra.mxu0 %v569
    %587 = vmatmul.f32.gmra.mxu0 %v567
    %v588 = vpop.f32.mrf.mxu0
    %v589 = vadd.f32 0.0, %v588
    %590 = vdwg.mxu0
    %v591 = vmul.f32 %v589, 0.35355338
    %v592 = vadd.f32 %v591, %v57
    %v593 = vsel %vm172, %v592, -inf
    %594 = vmax.xlane.f32.xlu0 %v593
    %v595 = vpop.xlane.xlu0 %594
    %v596 = vsub.f32 %v592, %v595
    %v597 = vmul.f32 %v596, 1.442695
    %v598 = vpow.pop %v597
    %v599 = vsel %vm172, %v598, 0.0
    %600 = vadd.xlane.f32.xlu0 %v599
    %v601 = vpop.xlane.xlu0 %600
    %v602 = vrcp.pop %v601
    %v603 = vmul.f32 %v598, %v602
    %604 = vrot.lane.b32.xlu0 %v167, 48
    %v605 = vpop.permute.xlu0 %604
    %v608 = vsel %vm172, %v603, 0
    %610 = vmatpush.msra.mxu0 0.0
    %611 = vmatpush.msra.mxu0 0.0
    %612 = vmatpush.msra.mxu0 0.0
    %613 = vmatpush.msra.mxu0 0.0
    %614 = vmatpush.msra.mxu0 0.0
    %615 = vmatpush.msra.mxu0 0.0
    %616 = vmatpush.msra.mxu0 0.0
    %617 = vmatpush.msra.mxu0 0.0
    %618 = vmatpush.msra.mxu0 0.0
    %619 = vmatpush.msra.mxu0 0.0
    %620 = vmatpush.msra.mxu0 0.0
    %621 = vmatpush.msra.mxu0 0.0
    %622 = vmatpush.msra.mxu0 0.0
    %623 = vmatpush.msra.mxu0 0.0
    %624 = vmatpush.msra.mxu0 0.0
    %625 = vmatpush.msra.mxu0 %v605
    %626 = vmatmul.f32.gmra.mxu0 %v608
    %v627 = vpop.f32.mrf.mxu0
    %v628 = vadd.f32 0.0, %v627
    %629 = vdwg.mxu0
    %v630 = vrot.slane %v167, 7
    %631 = vrot.lane.b32.xlu0 %v630, 40
    %v632 = vpop.permute.xlu0 %631
    %v634 = vsel %vm374, 0.0, %v632
    %v635 = vrot.slane %v167, 1
    %v637 = vsel %vm378, %v635, 0.0
    %639 = vrot.lane.b32.xlu0 %v637, 56
    %v640 = vpop.permute.xlu0 %639
    %v642 = vsel %vm172, %v634, %v605
    %v643 = vsel %vm385, %v642, %v640
    %v645 = vsel %vm390, %v643, 0
    %647 = vmatpush.msra.mxu0 0.0
    %648 = vmatpush.msra.mxu0 0.0
    %649 = vmatpush.msra.mxu0 0.0
    %650 = vmatpush.msra.mxu0 0.0
    %651 = vmatpush.msra.mxu0 0.0
    %652 = vmatpush.msra.mxu0 0.0
    %653 = vmatpush.msra.mxu0 0.0
    %654 = vmatpush.msra.mxu0 0.0
    %655 = vmatpush.msra.mxu0 0.0
    %656 = vmatpush.msra.mxu0 0.0
    %657 = vmatpush.msra.mxu0 0.0
    %658 = vmatpush.msra.mxu0 0.0
    %659 = vmatpush.msra.mxu0 0.0
    %660 = vmatpush.msra.mxu0 %v60
    %661 = vmatpush.msra.mxu0 %v59
    %662 = vmatpush.msra.mxu0 %v58
    %663 = vmatmul.f32.gmra.mxu0 %v645
    %v664 = vpop.f32.mrf.mxu0
    %v665 = vadd.f32 %v388, %v664
    %666 = vdwg.mxu0
    %v667 = vmax.f32 %v665, 0.0
    %669 = vrot.lane.b32.xlu0 %v561, 8
    %v670 = vpop.permute.xlu0 %669
    %673 = vrot.lane.b32.xlu0 %v628, 16
    %v674 = vpop.permute.xlu0 %673
    %677 = vrot.lane.b32.xlu0 %v667, 24
    %v678 = vpop.permute.xlu0 %677
    %v680 = vsel %vm172, %v494, %v670
    %v681 = vsel %vm385, %v680, %v674
    %v682 = vsel %vm390, %v681, %v678
    %v683 = vld [vmem:[%s8] sm:$0xff]
    %v684 = vld [vmem:[%s8 + $0x8] sm:$0xff]
    %v685 = vld [vmem:[%s8 + $0x10] sm:$0xff]
    %v686 = vld [vmem:[%s8 + $0x18] sm:$0xff]
    %v687 = vld [vmem:[%s9] sm:$0x1]
    %v689 = vperm.slane %v687, 0
    %v692 = vsel %vm64, %v429, 0
    %v695 = vsel %vm64, %v682, 0
    %697 = vmatpush.msra.mxu0 0.0
    %698 = vmatpush.msra.mxu0 0.0
    %699 = vmatpush.msra.mxu0 0.0
    %700 = vmatpush.msra.mxu0 0.0
    %701 = vmatpush.msra.mxu0 0.0
    %702 = vmatpush.msra.mxu0 0.0
    %703 = vmatpush.msra.mxu0 0.0
    %704 = vmatpush.msra.mxu0 0.0
    %705 = vmatpush.msra.mxu0 0.0
    %706 = vmatpush.msra.mxu0 0.0
    %707 = vmatpush.msra.mxu0 0.0
    %708 = vmatpush.msra.mxu0 0.0
    %709 = vmatpush.msra.mxu0 %v686
    %710 = vmatpush.msra.mxu0 %v685
    %711 = vmatpush.msra.mxu0 %v684
    %712 = vmatpush.msra.mxu0 %v683
    %713 = vmatmul.f32.gmra.mxu0 %v692
    %v714 = vpop.f32.mrf.mxu0
    %v715 = vadd.f32 %v689, %v714
    %716 = vmatmul.f32.gmra.mxu0 %v695
    %v717 = vpop.f32.mrf.mxu0
    %v718 = vadd.f32 %v689, %v717
    %719 = vdwg.mxu0
    %v720 = vadd.f32 %v54, %v715
    %v721 = vadd.f32 %v55, %v718
    %v722 = vld [vmem:[%s10] sm:$0x1]
    %v723 = vld [vmem:[%s11] sm:$0x1]
    %v724 = vsel %vm64, %v720, 0.0
    %725 = vadd.xlane.f32.xlu0 %v724
    %v726 = vpop.xlane.xlu0 %725
    %v727 = vsel %vm64, %v721, 0.0
    %728 = vadd.xlane.f32.xlu0 %v727
    %v729 = vpop.xlane.xlu0 %728
    %v730 = vmul.f32 %v726, %v77
    %v731 = vmul.f32 %v729, %v77
    %v732 = vsub.f32 %v720, %v730
    %v733 = vsub.f32 %v721, %v731
    %v734 = vmul.f32 %v732, %v732
    %v735 = vmul.f32 %v733, %v733
    %v736 = vsel %vm64, %v734, 0.0
    %737 = vadd.xlane.f32.xlu0 %v736
    %v738 = vpop.xlane.xlu0 %737
    %v739 = vsel %vm64, %v735, 0.0
    %740 = vadd.xlane.f32.xlu0 %v739
    %v741 = vpop.xlane.xlu0 %740
    %v742 = vmul.f32 %v738, 0.032258064
    %v743 = vmul.f32 %v741, 0.032258064
    %v744 = vrsqrt.pop %v742
    %v745 = vmul.f32 %v744, %v742
    %v746 = vmul.f32 %v745, %v744
    %v747 = vmul.f32 0.5, %v746
    %v748 = vsub.f32 1.5, %v747
    %v749 = vmul.f32 %v744, %v748
    %v750 = vmul.f32 %v742, %v749
    %vm751 = vcmp.eq.f32.partialorder %v742, inf
    %v752 = vsel %vm751, %v742, %v750
    %vm753 = vcmp.eq.f32.partialorder %v742, 0.0
    %v754 = vand.u32 %v742, 2147483648
    %v755 = vsel %vm753, %v754, %v752
    %v756 = vrsqrt.pop %v743
    %v757 = vmul.f32 %v756, %v743
    %v758 = vmul.f32 %v757, %v756
    %v759 = vmul.f32 0.5, %v758
    %v760 = vsub.f32 1.5, %v759
    %v761 = vmul.f32 %v756, %v760
    %v762 = vmul.f32 %v743, %v761
    %vm763 = vcmp.eq.f32.partialorder %v743, inf
    %v764 = vsel %vm763, %v743, %v762
    %vm765 = vcmp.eq.f32.partialorder %v743, 0.0
    %v766 = vand.u32 %v743, 2147483648
    %v767 = vsel %vm765, %v766, %v764
    %v768 = vadd.f32 %v755, 1e-06
    %v769 = vadd.f32 %v767, 1e-06
    %v770 = vrcp.pop %v768
    %v771 = vrcp.pop %v769
    %v773 = vperm.slane %v722, 0
    %v775 = vmul.f32 %v773, %v732
    %v776 = vmul.f32 %v773, %v733
    %v777 = vmul.f32 %v775, %v770
    %v778 = vmul.f32 %v776, %v771
    %v780 = vperm.slane %v723, 0
    %v782 = vadd.f32 %v777, %v780
    %v783 = vadd.f32 %v778, %v780
    %v784 = vld [vmem:[%s12] sm:$0xff]
    %v785 = vld [vmem:[%s12 + $0x8] sm:$0xff]
    %v786 = vld [vmem:[%s12 + $0x10] sm:$0xff]
    %v787 = vld [vmem:[%s12 + $0x18] sm:$0xff]
    %v788 = vld [vmem:[%s13] sm:$0x1]
    %v790 = vperm.slane %v788, 0
    %v793 = vsel %vm64, %v782, 0
    %v796 = vsel %vm64, %v783, 0
    %798 = vmatpush.msra.mxu0 0.0
    %799 = vmatpush.msra.mxu0 0.0
    %800 = vmatpush.msra.mxu0 0.0
    %801 = vmatpush.msra.mxu0 0.0
    %802 = vmatpush.msra.mxu0 0.0
    %803 = vmatpush.msra.mxu0 0.0
    %804 = vmatpush.msra.mxu0 0.0
    %805 = vmatpush.msra.mxu0 0.0
    %806 = vmatpush.msra.mxu0 0.0
    %807 = vmatpush.msra.mxu0 0.0
    %808 = vmatpush.msra.mxu0 0.0
    %809 = vmatpush.msra.mxu0 0.0
    %810 = vmatpush.msra.mxu0 %v787
    %811 = vmatpush.msra.mxu0 %v786
    %812 = vmatpush.msra.mxu0 %v785
    %813 = vmatpush.msra.mxu0 %v784
    %814 = vmatmul.f32.gmra.mxu0 %v793
    %v815 = vpop.f32.mrf.mxu0
    %v816 = vadd.f32 %v790, %v815
    %817 = vmatmul.f32.gmra.mxu0 %v796
    %v818 = vpop.f32.mrf.mxu0
    %v819 = vadd.f32 %v790, %v818
    %820 = vdwg.mxu0
    %v821 = vmul.f32 %v816, 0.5
    %v822 = vmul.f32 %v819, 0.5
    %v823 = vmul.f32 %v816, %v816
    %v824 = vmul.f32 %v819, %v819
    %v825 = vmul.f32 %v823, %v816
    %v826 = vmul.f32 %v824, %v819
    %v827 = vmul.f32 %v825, 0.044715
    %v828 = vmul.f32 %v826, 0.044715
    %v829 = vadd.f32 %v816, %v827
    %v830 = vadd.f32 %v819, %v828
    %v831 = vmul.f32 %v829, 0.7978846
    %v832 = vmul.f32 %v830, 0.7978846
    %v833 = vtanh.pop %v831
    %v834 = vtanh.pop %v832
    %v835 = vadd.f32 %v833, 1.0
    %v836 = vadd.f32 %v834, 1.0
    %v837 = vmul.f32 %v821, %v835
    %v838 = vmul.f32 %v822, %v836
    %v839 = vld [vmem:[%s14] sm:$0xff]
    %v840 = vld [vmem:[%s14 + $0x8] sm:$0xff]
    %v841 = vld [vmem:[%s14 + $0x10] sm:$0xff]
    %v842 = vld [vmem:[%s14 + $0x18] sm:$0xff]
    %v843 = vld [vmem:[%s14 + $0x20] sm:$0xff]
    %v844 = vld [vmem:[%s14 + $0x28] sm:$0xff]
    %v845 = vld [vmem:[%s14 + $0x30] sm:$0xff]
    %v846 = vld [vmem:[%s14 + $0x38] sm:$0xff]
    %v847 = vld [vmem:[%s15] sm:$0x1]
    %v849 = vperm.slane %v847, 0
    %vm851 = vcmask 523264
    %v853 = vsel %vm851, %v837, 0
    %v856 = vsel %vm851, %v838, 0
    %858 = vmatpush.msra.mxu0 0.0
    %859 = vmatpush.msra.mxu0 0.0
    %860 = vmatpush.msra.mxu0 0.0
    %861 = vmatpush.msra.mxu0 0.0
    %862 = vmatpush.msra.mxu0 0.0
    %863 = vmatpush.msra.mxu0 0.0
    %864 = vmatpush.msra.mxu0 0.0
    %865 = vmatpush.msra.mxu0 0.0
    %866 = vmatpush.msra.mxu0 %v846
    %867 = vmatpush.msra.mxu0 %v845
    %868 = vmatpush.msra.mxu0 %v844
    %869 = vmatpush.msra.mxu0 %v843
    %870 = vmatpush.msra.mxu0 %v842
    %871 = vmatpush.msra.mxu0 %v841
    %872 = vmatpush.msra.mxu0 %v840
    %873 = vmatpush.msra.mxu0 %v839
    %874 = vmatmul.f32.gmra.mxu0 %v853
    %v875 = vpop.f32.mrf.mxu0
    %v876 = vadd.f32 %v849, %v875
    %877 = vmatmul.f32.gmra.mxu0 %v856
    %v878 = vpop.f32.mrf.mxu0
    %v879 = vadd.f32 %v849, %v878
    %880 = vdwg.mxu0
    %v881 = vadd.f32 %v720, %v876
    %v882 = vadd.f32 %v721, %v879
    %883 = vst.msk [vmem:[#allocation2] sm:$0xff] %vm64, %v881
    %884 = vst.msk [vmem:[#allocation2 + $0x8] sm:$0xff] %vm64, %v882
    // Predicated region
    $region66: #{locker_transformer_block.1} parent=1 // pred_check
      _
    $region67: #{locker_transformer_block.1} parent=1 // pred_check_branch
      %886 = sbr.rel (0) target = $region69
    $region68: #{locker_transformer_block.1} parent=1 // pred_region
      %888 = vsyncadd [#allocation3], 0
      %s889 = sshll.u32 [#allocation2], 4
      %s890 = int_to_ptr.vmem [resolvable:$true] %s889
      %s891 = sshll.u32 %s16, 4
      %s892 = int_to_ptr.hbm [resolvable:$true] %s891
      %897 = dma.vmem_to_hbm [thread:$0]  %s890, 256, %s892, [#allocation3], 128, 128, 8
    $region69: #{locker_transformer_block.1} parent=1 // pred_fallthru
      _
    // Predicated region
    $region70: #{locker_transformer_block.1} parent=1 // pred_check
      _
    $region71: #{locker_transformer_block.1} parent=1 // pred_check_branch
      %899 = sbr.rel (0) target = $region73
    $region72: #{locker_transformer_block.1} parent=1 // pred_region
      %901 = dma.done [#allocation3], 256
    $region73: #{locker_transformer_block.1} parent=1 // pred_fallthru
      _
    %902 = vsyncpa [#allocation3], 1

</llo_original>
